<compile_context>
chip_gen: v6e
topology: v6e:2x2x1
jax: 0.10.0
libtpu: 0.0.40
codegen_flags: <defaults>
</compile_context>

<pallas_src>
import functools

import jax
import jax.numpy as jnp
from jax.experimental import pallas as pl
from jax.experimental.pallas import tpu as pltpu


def _round_up(x, m):
    return ((x + m - 1) // m) * m


# ----------------------------------------------------------------------------
# Pallas kernel: tiled matmul, f32 accumulator, fused bias + activation
# ----------------------------------------------------------------------------
def _matmul_bias_act_kernel(x_ref, w_ref, b_ref, o_ref, acc_ref, *, act):
    k = pl.program_id(1)

    @pl.when(k == 0)
    def _():
        acc_ref[...] = jnp.zeros_like(acc_ref)

    acc_ref[...] += jnp.dot(x_ref[...], w_ref[...],
                            preferred_element_type=jnp.float32)

    @pl.when(k == pl.num_programs(1) - 1)
    def _():
        acc = acc_ref[...] + b_ref[...]            # (TM, NP) + (1, NP), f32
        if act == "relu":
            acc = jnp.maximum(acc, 0.0)
        elif act == "sigmoid":
            # exp -> EUP slot; exact divide keeps the output strictly in [0, 1]
            acc = 1.0 / (1.0 + jnp.exp(-acc))
        o_ref[...] = acc.astype(o_ref.dtype)


def matmul_bias_act(x, w, b, act):
    """Fused x:(M,K) @ w:(K,N) + b:(N,) -> activation, as a tiled Pallas call.

    * M blocked (TM up to 256) and marked "parallel" (2-TC sharding on v7x).
    * N (lane axis) zero-padded to a multiple of 128 -> unmasked dense stores.
    * K zero-padded to a multiple of 8; accumulator + pl.when handle multi-tile
      K for larger shapes (single K tile for this model's layer sizes).
    * MXU operands in bf16, accumulation and epilogue in f32.
    """
    M, K = x.shape
    _, N = w.shape

    NP = _round_up(N, 128)

    if M >= 256:
        TM = 256
        MP = _round_up(M, TM)
    else:
        TM = _round_up(M, 8)
        MP = TM

    if K <= 2048:
        TK = _round_up(K, 8)
        KP = TK
    else:
        TK = 512
        KP = _round_up(K, TK)

    n_m, n_k = MP // TM, KP // TK

    xp = jnp.pad(x.astype(jnp.bfloat16), ((0, MP - M), (0, KP - K)))
    wp = jnp.pad(w.astype(jnp.bfloat16), ((0, KP - K), (0, NP - N)))
    bp = jnp.pad(b.astype(jnp.float32), (0, NP - N)).reshape(1, NP)

    out = pl.pallas_call(
        functools.partial(_matmul_bias_act_kernel, act=act),
        out_shape=jax.ShapeDtypeStruct((MP, NP), jnp.float32),
        grid=(n_m, n_k),
        in_specs=[
            pl.BlockSpec((TM, TK), lambda i, k: (i, k)),   # patches: streamed
            pl.BlockSpec((TK, NP), lambda i, k: (k, 0)),   # weight: resident over M
            pl.BlockSpec((1, NP), lambda i, k: (0, 0)),    # bias:   resident
        ],
        out_specs=pl.BlockSpec((TM, NP), lambda i, k: (i, 0)),
        scratch_shapes=[pltpu.VMEM((TM, NP), jnp.float32)],
        compiler_params=pltpu.CompilerParams(
            dimension_semantics=("parallel", "arbitrary"),
            vmem_limit_bytes=32 * 1024 * 1024,
        ),
    )(xp, wp, bp)
    return out[:M, :N]


# ----------------------------------------------------------------------------
# Plain-JAX glue: NHWC im2col + layer wrappers
# ----------------------------------------------------------------------------
# TODO(synk): fuse im2col patch extraction into the Pallas kernel (halo
# index_map or manual DMA gather) to avoid the k^2 HBM patch blow-up.
def _im2col_nhwc(x, k, stride, pad):
    """x: (N, H, W, C) -> (N*OH*OW, k*k*C), patch order (kh, kw, c)."""
    n, h, w, c = x.shape
    xp = jnp.pad(x, ((0, 0), (pad, pad), (pad, pad), (0, 0)))
    oh = (h + 2 * pad - k) // stride + 1
    ow = (w + 2 * pad - k) // stride + 1
    cols = []
    for kh in range(k):
        for kw in range(k):
            cols.append(
                xp[:, kh:kh + stride * oh:stride, kw:kw + stride * ow:stride, :])
    patches = jnp.concatenate(cols, axis=-1)          # (n, oh, ow, k*k*c)
    return patches.reshape(n * oh * ow, k * k * c), oh, ow


def conv2d_nhwc(x, weight, bias, stride, pad, act):
    """PyTorch-style Conv2d.  weight: (Cout, Cin, k, k).  x/out: NHWC."""
    n = x.shape[0]
    cout, cin, k, _ = weight.shape
    patches, oh, ow = _im2col_nhwc(x, k, stride, pad)
    w2 = weight.transpose(2, 3, 1, 0).reshape(k * k * cin, cout)  # (kh,kw,ci)->co
    out = matmul_bias_act(patches, w2, bias, act)     # (N*OH*OW, Cout)
    return out.reshape(n, oh, ow, cout)


def conv_transpose2d_s2_nhwc(x, weight, bias, act):
    """PyTorch ConvTranspose2d(k=4, stride=2, padding=1).  weight: (Cin, Cout, 4, 4).

    Sub-pixel decomposition: output phase (py, px) at (q, r) sums the 2x2
    window of the pad-1 input starting at (q+py, r+px) against weight taps
    (3-py-2a, 3-px-2b).  All 4 phases share one im2col and one Pallas matmul
    with 4*Cout output columns; results are interleaved back afterwards.
    """
    n, h, w, cin = x.shape
    cout = weight.shape[1]

    xp = jnp.pad(x, ((0, 0), (1, 1), (1, 1), (0, 0)))               # (n, h+2, w+2, cin)
    cols = [xp[:, a:a + h + 1, b:b + w + 1, :]
            for a in range(2) for b in range(2)]                    # order (a, b, ci)
    patches = jnp.concatenate(cols, axis=-1)                        # (n, h+1, w+1, 4*cin)
    patches = patches.reshape(n * (h + 1) * (w + 1), 4 * cin)

    wf = weight[:, :, ::-1, ::-1]                                   # (ci, co, 4, 4)
    wf = wf.reshape(cin, cout, 2, 2, 2, 2)                          # (ci, co, a, py, b, px)
    wc = wf.transpose(2, 4, 0, 3, 5, 1).reshape(4 * cin, 4 * cout)  # (a,b,ci) x (py,px,co)
    bc = jnp.tile(bias, 4)                                          # (4*cout,)

    y = matmul_bias_act(patches, wc, bc, act)                       # (M, 4*cout)
    y = y.reshape(n, h + 1, w + 1, 2, 2, cout)

    phases = [y[:, py:py + h, px:px + w, py, px, :]
              for py in range(2) for px in range(2)]                # each (n, h, w, cout)
    out = jnp.stack(phases, axis=0).reshape(2, 2, n, h, w, cout)
    out = out.transpose(2, 3, 0, 4, 1, 5).reshape(n, 2 * h, 2 * w, cout)
    return out


# ----------------------------------------------------------------------------
# Model: parameter init + forward (NCHW at the boundary, NHWC inside)
# ----------------------------------------------------------------------------
def init_params(key):
    ks = jax.random.split(key, 8)

    def u(k, shape, fan_in):
        bound = 1.0 / jnp.sqrt(fan_in)
        return jax.random.uniform(k, shape, jnp.float32, -bound, bound)

    return {
        # encoder: Conv2d(3, 64, 3, s=2, p=1), Conv2d(64, 128, 3, s=2, p=1)
        "enc1_w": u(ks[0], (64, 3, 3, 3), 3 * 9),
        "enc1_b": u(ks[1], (64,), 3 * 9),
        "enc2_w": u(ks[2], (128, 64, 3, 3), 64 * 9),
        "enc2_b": u(ks[3], (128,), 64 * 9),
        # decoder: ConvTranspose2d(128, 64, 4, s=2, p=1),
        #          ConvTranspose2d(64, 3, 4, s=2, p=1)
        "dec1_w": u(ks[4], (128, 64, 4, 4), 128 * 16),
        "dec1_b": u(ks[5], (64,), 128 * 16),
        "dec2_w": u(ks[6], (64, 3, 4, 4), 64 * 16),
        "dec2_b": u(ks[7], (3,), 64 * 16),
    }


def conv_autoencoder_forward(params, x_nchw):
    x = x_nchw.transpose(0, 2, 3, 1)                                # NCHW -> NHWC
    h = conv2d_nhwc(x, params["enc1_w"], params["enc1_b"], 2, 1, "relu")
    h = conv2d_nhwc(h, params["enc2_w"], params["enc2_b"], 2, 1, "relu")
    h = conv_transpose2d_s2_nhwc(h, params["dec1_w"], params["dec1_b"], "relu")
    h = conv_transpose2d_s2_nhwc(h, params["dec2_w"], params["dec2_b"], "sigmoid")
    return h.transpose(0, 3, 1, 2)                                  # NHWC -> NCHW


# ----------------------------------------------------------------------------
# Pure-JAX f32 reference (PyTorch semantics) for a loose correctness check
# ----------------------------------------------------------------------------
def _ref_forward(params, x):
    P = jax.lax.Precision.HIGHEST
    dn = ("NCHW", "OIHW", "NCHW")

    def conv(h, w, b, s, p):
        y = jax.lax.conv_general_dilated(h, w, (s, s), [(p, p), (p, p)],
                                         dimension_numbers=dn, precision=P)
        return y + b.reshape(1, -1, 1, 1)

    def convT(h, w, b, s, p, k):
        w_eff = w[:, :, ::-1, ::-1].transpose(1, 0, 2, 3)
        y = jax.lax.conv_general_dilated(h, w_eff, (1, 1),
                                         [(k - 1 - p, k - 1 - p)] * 2,
                                         lhs_dilation=(s, s),
                                         dimension_numbers=dn, precision=P)
        return y + b.reshape(1, -1, 1, 1)

    h = jax.nn.relu(conv(x, params["enc1_w"], params["enc1_b"], 2, 1))
    h = jax.nn.relu(conv(h, params["enc2_w"], params["enc2_b"], 2, 1))
    h = jax.nn.relu(convT(h, params["dec1_w"], params["dec1_b"], 2, 1, 4))
    h = jax.nn.sigmoid(convT(h, params["dec2_w"], params["dec2_b"], 2, 1, 4))
    return h


if __name__ == "__main__":
    key = jax.random.PRNGKey(0)
    k_param, k_x = jax.random.split(key)
    params = init_params(k_param)

    # NCHW input, 3 channels as required by the module
    x = jax.random.normal(k_x, (2, 3, 16, 16), dtype=jnp.float32)

    fwd = jax.jit(conv_autoencoder_forward)
    out = jax.block_until_ready(fwd(params, x))

    assert out.shape == (2, 3, 16, 16), out.shape
    assert bool(jnp.all(jnp.isfinite(out)))
    assert bool(jnp.all((out >= 0.0) & (out <= 1.0)))     # sigmoid output range

    ref = jax.jit(_ref_forward)(params, x)
    max_err = float(jnp.max(jnp.abs(out - ref)))
    assert max_err < 5e-2, f"max |err| vs f32 reference = {max_err}"

    print("KERNEL_OK")
</pallas_src>

<mosaic_0001>
module attributes {stable_mosaic.version = 11 : i64} {
  func.func @_matmul_bias_act_kernel(%arg0: i32, %arg1: i32, %arg2: memref<128x32xbf16, #tpu.memory_space<vmem>>, %arg3: memref<32x128xbf16, #tpu.memory_space<vmem>>, %arg4: memref<1x128xf32, #tpu.memory_space<vmem>>, %arg5: memref<128x128xf32, #tpu.memory_space<vmem>>, %arg6: memref<128x128xf32, #tpu.memory_space<vmem>>) attributes {dimension_semantics = [#tpu.dimension_semantics<parallel>, #tpu.dimension_semantics<arbitrary>], iteration_bounds = array<i64: 1, 1>, scalar_prefetch = 0 : i64, scratch_operands = 1 : i64, tpu.core_type = #tpu.core_type<tc>, window_params = [{transform_indices = @transform_0, window_bounds = array<i64: 128, 32>}, {transform_indices = @transform_1, window_bounds = array<i64: 32, 128>}, {pipeline_mode = #tpu.pipeline_mode<synchronous>, transform_indices = @transform_2, window_bounds = array<i64: 1, 128>}, {transform_indices = @transform_3, window_bounds = array<i64: 128, 128>}]} {
    %c0_i32 = arith.constant 0 : i32
    %0 = arith.cmpi eq, %arg1, %c0_i32 : i32
    %1 = arith.extui %0 : i1 to i32
    %c0_i32_0 = arith.constant 0 : i32
    %2 = arith.cmpi ne, %1, %c0_i32_0 : i32
    scf.if %2 {
      %cst_10 = arith.constant 0.000000e+00 : f32
      %12 = vector.broadcast %cst_10 : f32 to vector<128x128xf32>
      %c0_11 = arith.constant 0 : index
      %c0_12 = arith.constant 0 : index
      %13 = vector.load %arg6[%c0_11, %c0_12] : memref<128x128xf32, #tpu.memory_space<vmem>>, vector<128x128xf32>
      tpu.vector_store %arg6[%c0_11, %c0_12], %12 {strides = array<i32>} : memref<128x128xf32, #tpu.memory_space<vmem>>, vector<128x128xf32>,
    } else {
    }
    %c0 = arith.constant 0 : index
    %c0_1 = arith.constant 0 : index
    %3 = vector.load %arg6[%c0, %c0_1] : memref<128x128xf32, #tpu.memory_space<vmem>>, vector<128x128xf32>
    %c0_2 = arith.constant 0 : index
    %c0_3 = arith.constant 0 : index
    %4 = vector.load %arg2[%c0_2, %c0_3] : memref<128x32xbf16, #tpu.memory_space<vmem>>, vector<128x32xbf16>
    %c0_4 = arith.constant 0 : index
    %c0_5 = arith.constant 0 : index
    %5 = vector.load %arg3[%c0_4, %c0_5] : memref<32x128xbf16, #tpu.memory_space<vmem>>, vector<32x128xbf16>
    %cst = arith.constant dense<0.000000e+00> : vector<128x128xf32>
    %6 = tpu.matmul %4, %5, %cst {dimension_numbers = #tpu.dot_dimension_numbers<[1], [0], [0], [1], [0, 0, 1, 1], [], []>} : vector<128x32xbf16>, vector<32x128xbf16>, vector<128x128xf32> -> vector<128x128xf32>
    %7 = arith.addf %3, %6 : vector<128x128xf32>
    %c0_6 = arith.constant 0 : index
    %c0_7 = arith.constant 0 : index
    %8 = vector.load %arg6[%c0_6, %c0_7] : memref<128x128xf32, #tpu.memory_space<vmem>>, vector<128x128xf32>
    tpu.vector_store %arg6[%c0_6, %c0_7], %7 {strides = array<i32>} : memref<128x128xf32, #tpu.memory_space<vmem>>, vector<128x128xf32>,
    %c0_i32_8 = arith.constant 0 : i32
    %9 = arith.cmpi eq, %arg1, %c0_i32_8 : i32
    %10 = arith.extui %9 : i1 to i32
    %c0_i32_9 = arith.constant 0 : i32
    %11 = arith.cmpi ne, %10, %c0_i32_9 : i32
    scf.if %11 {
      %c0_10 = arith.constant 0 : index
      %c0_11 = arith.constant 0 : index
      %12 = vector.load %arg6[%c0_10, %c0_11] : memref<128x128xf32, #tpu.memory_space<vmem>>, vector<128x128xf32>
      %c0_12 = arith.constant 0 : index
      %c0_13 = arith.constant 0 : index
      %13 = vector.load %arg4[%c0_12, %c0_13] : memref<1x128xf32, #tpu.memory_space<vmem>>, vector<1x128xf32>
      %14 = vector.broadcast %13 : vector<1x128xf32> to vector<128x128xf32>
      %15 = arith.addf %12, %14 : vector<128x128xf32>
      %cst_14 = arith.constant 0.000000e+00 : f32
      %16 = vector.broadcast %cst_14 : f32 to vector<128x128xf32>
      %17 = arith.maximumf %15, %16 : vector<128x128xf32>
      %c0_15 = arith.constant 0 : index
      %c0_16 = arith.constant 0 : index
      %18 = vector.load %arg5[%c0_15, %c0_16] : memref<128x128xf32, #tpu.memory_space<vmem>>, vector<128x128xf32>
      tpu.vector_store %arg5[%c0_15, %c0_16], %17 {strides = array<i32>} : memref<128x128xf32, #tpu.memory_space<vmem>>, vector<128x128xf32>,
    } else {
    }
    return
  }
  func.func @transform_0(%arg0: i32, %arg1: i32) -> (i32, i32) {
    %c0_i32 = arith.constant 0 : i32
    return %arg0, %arg1 : i32, i32
  }
  func.func @transform_1(%arg0: i32, %arg1: i32) -> (i32, i32) {
    %c0_i32 = arith.constant 0 : i32
    %c0_i32_0 = arith.constant 0 : i32
    return %arg1, %c0_i32 : i32, i32
  }
  func.func @transform_2(%arg0: i32, %arg1: i32) -> (i32, i32) {
    %c0_i32 = arith.constant 0 : i32
    %c0_i32_0 = arith.constant 0 : i32
    %c0_i32_1 = arith.constant 0 : i32
    return %c0_i32, %c0_i32_0 : i32, i32
  }
  func.func @transform_3(%arg0: i32, %arg1: i32) -> (i32, i32) {
    %c0_i32 = arith.constant 0 : i32
    %c0_i32_0 = arith.constant 0 : i32
    return %arg0, %c0_i32 : i32, i32
  }
}

module attributes {stable_mosaic.version = 11 : i64} {
  func.func @_matmul_bias_act_kernel(%arg0: i32, %arg1: i32, %arg2: memref<32x576xbf16, #tpu.memory_space<vmem>>, %arg3: memref<576x128xbf16, #tpu.memory_space<vmem>>, %arg4: memref<1x128xf32, #tpu.memory_space<vmem>>, %arg5: memref<32x128xf32, #tpu.memory_space<vmem>>, %arg6: memref<32x128xf32, #tpu.memory_space<vmem>>) attributes {dimension_semantics = [#tpu.dimension_semantics<parallel>, #tpu.dimension_semantics<arbitrary>], iteration_bounds = array<i64: 1, 1>, scalar_prefetch = 0 : i64, scratch_operands = 1 : i64, tpu.core_type = #tpu.core_type<tc>, window_params = [{transform_indices = @transform_0, window_bounds = array<i64: 32, 576>}, {transform_indices = @transform_1, window_bounds = array<i64: 576, 128>}, {pipeline_mode = #tpu.pipeline_mode<synchronous>, transform_indices = @transform_2, window_bounds = array<i64: 1, 128>}, {transform_indices = @transform_3, window_bounds = array<i64: 32, 128>}]} {
    %c0_i32 = arith.constant 0 : i32
    %0 = arith.cmpi eq, %arg1, %c0_i32 : i32
    %1 = arith.extui %0 : i1 to i32
    %c0_i32_0 = arith.constant 0 : i32
    %2 = arith.cmpi ne, %1, %c0_i32_0 : i32
    scf.if %2 {
      %cst_10 = arith.constant 0.000000e+00 : f32
      %12 = vector.broadcast %cst_10 : f32 to vector<32x128xf32>
      %c0_11 = arith.constant 0 : index
      %c0_12 = arith.constant 0 : index
      %13 = vector.load %arg6[%c0_11, %c0_12] : memref<32x128xf32, #tpu.memory_space<vmem>>, vector<32x128xf32>
      tpu.vector_store %arg6[%c0_11, %c0_12], %12 {strides = array<i32>} : memref<32x128xf32, #tpu.memory_space<vmem>>, vector<32x128xf32>,
    } else {
    }
    %c0 = arith.constant 0 : index
    %c0_1 = arith.constant 0 : index
    %3 = vector.load %arg6[%c0, %c0_1] : memref<32x128xf32, #tpu.memory_space<vmem>>, vector<32x128xf32>
    %c0_2 = arith.constant 0 : index
    %c0_3 = arith.constant 0 : index
    %4 = vector.load %arg2[%c0_2, %c0_3] : memref<32x576xbf16, #tpu.memory_space<vmem>>, vector<32x576xbf16>
    %c0_4 = arith.constant 0 : index
    %c0_5 = arith.constant 0 : index
    %5 = vector.load %arg3[%c0_4, %c0_5] : memref<576x128xbf16, #tpu.memory_space<vmem>>, vector<576x128xbf16>
    %cst = arith.constant dense<0.000000e+00> : vector<32x128xf32>
    %6 = tpu.matmul %4, %5, %cst {dimension_numbers = #tpu.dot_dimension_numbers<[1], [0], [0], [1], [0, 0, 1, 1], [], []>} : vector<32x576xbf16>, vector<576x128xbf16>, vector<32x128xf32> -> vector<32x128xf32>
    %7 = arith.addf %3, %6 : vector<32x128xf32>
    %c0_6 = arith.constant 0 : index
    %c0_7 = arith.constant 0 : index
    %8 = vector.load %arg6[%c0_6, %c0_7] : memref<32x128xf32, #tpu.memory_space<vmem>>, vector<32x128xf32>
    tpu.vector_store %arg6[%c0_6, %c0_7], %7 {strides = array<i32>} : memref<32x128xf32, #tpu.memory_space<vmem>>, vector<32x128xf32>,
    %c0_i32_8 = arith.constant 0 : i32
    %9 = arith.cmpi eq, %arg1, %c0_i32_8 : i32
    %10 = arith.extui %9 : i1 to i32
    %c0_i32_9 = arith.constant 0 : i32
    %11 = arith.cmpi ne, %10, %c0_i32_9 : i32
    scf.if %11 {
      %c0_10 = arith.constant 0 : index
      %c0_11 = arith.constant 0 : index
      %12 = vector.load %arg6[%c0_10, %c0_11] : memref<32x128xf32, #tpu.memory_space<vmem>>, vector<32x128xf32>
      %c0_12 = arith.constant 0 : index
      %c0_13 = arith.constant 0 : index
      %13 = vector.load %arg4[%c0_12, %c0_13] : memref<1x128xf32, #tpu.memory_space<vmem>>, vector<1x128xf32>
      %14 = vector.broadcast %13 : vector<1x128xf32> to vector<32x128xf32>
      %15 = arith.addf %12, %14 : vector<32x128xf32>
      %cst_14 = arith.constant 0.000000e+00 : f32
      %16 = vector.broadcast %cst_14 : f32 to vector<32x128xf32>
      %17 = arith.maximumf %15, %16 : vector<32x128xf32>
      %c0_15 = arith.constant 0 : index
      %c0_16 = arith.constant 0 : index
      %18 = vector.load %arg5[%c0_15, %c0_16] : memref<32x128xf32, #tpu.memory_space<vmem>>, vector<32x128xf32>
      tpu.vector_store %arg5[%c0_15, %c0_16], %17 {strides = array<i32>} : memref<32x128xf32, #tpu.memory_space<vmem>>, vector<32x128xf32>,
    } else {
    }
    return
  }
  func.func @transform_0(%arg0: i32, %arg1: i32) -> (i32, i32) {
    %c0_i32 = arith.constant 0 : i32
    return %arg0, %arg1 : i32, i32
  }
  func.func @transform_1(%arg0: i32, %arg1: i32) -> (i32, i32) {
    %c0_i32 = arith.constant 0 : i32
    %c0_i32_0 = arith.constant 0 : i32
    return %arg1, %c0_i32 : i32, i32
  }
  func.func @transform_2(%arg0: i32, %arg1: i32) -> (i32, i32) {
    %c0_i32 = arith.constant 0 : i32
    %c0_i32_0 = arith.constant 0 : i32
    %c0_i32_1 = arith.constant 0 : i32
    return %c0_i32, %c0_i32_0 : i32, i32
  }
  func.func @transform_3(%arg0: i32, %arg1: i32) -> (i32, i32) {
    %c0_i32 = arith.constant 0 : i32
    %c0_i32_0 = arith.constant 0 : i32
    return %arg0, %c0_i32 : i32, i32
  }
}

module attributes {stable_mosaic.version = 11 : i64} {
  func.func @_matmul_bias_act_kernel(%arg0: i32, %arg1: i32, %arg2: memref<56x512xbf16, #tpu.memory_space<vmem>>, %arg3: memref<512x256xbf16, #tpu.memory_space<vmem>>, %arg4: memref<1x256xf32, #tpu.memory_space<vmem>>, %arg5: memref<56x256xf32, #tpu.memory_space<vmem>>, %arg6: memref<56x256xf32, #tpu.memory_space<vmem>>) attributes {dimension_semantics = [#tpu.dimension_semantics<parallel>, #tpu.dimension_semantics<arbitrary>], iteration_bounds = array<i64: 1, 1>, scalar_prefetch = 0 : i64, scratch_operands = 1 : i64, tpu.core_type = #tpu.core_type<tc>, window_params = [{transform_indices = @transform_0, window_bounds = array<i64: 56, 512>}, {transform_indices = @transform_1, window_bounds = array<i64: 512, 256>}, {pipeline_mode = #tpu.pipeline_mode<synchronous>, transform_indices = @transform_2, window_bounds = array<i64: 1, 256>}, {transform_indices = @transform_3, window_bounds = array<i64: 56, 256>}]} {
    %c0_i32 = arith.constant 0 : i32
    %0 = arith.cmpi eq, %arg1, %c0_i32 : i32
    %1 = arith.extui %0 : i1 to i32
    %c0_i32_0 = arith.constant 0 : i32
    %2 = arith.cmpi ne, %1, %c0_i32_0 : i32
    scf.if %2 {
      %cst_10 = arith.constant 0.000000e+00 : f32
      %12 = vector.broadcast %cst_10 : f32 to vector<56x256xf32>
      %c0_11 = arith.constant 0 : index
      %c0_12 = arith.constant 0 : index
      %13 = vector.load %arg6[%c0_11, %c0_12] : memref<56x256xf32, #tpu.memory_space<vmem>>, vector<56x256xf32>
      tpu.vector_store %arg6[%c0_11, %c0_12], %12 {strides = array<i32>} : memref<56x256xf32, #tpu.memory_space<vmem>>, vector<56x256xf32>,
    } else {
    }
    %c0 = arith.constant 0 : index
    %c0_1 = arith.constant 0 : index
    %3 = vector.load %arg6[%c0, %c0_1] : memref<56x256xf32, #tpu.memory_space<vmem>>, vector<56x256xf32>
    %c0_2 = arith.constant 0 : index
    %c0_3 = arith.constant 0 : index
    %4 = vector.load %arg2[%c0_2, %c0_3] : memref<56x512xbf16, #tpu.memory_space<vmem>>, vector<56x512xbf16>
    %c0_4 = arith.constant 0 : index
    %c0_5 = arith.constant 0 : index
    %5 = vector.load %arg3[%c0_4, %c0_5] : memref<512x256xbf16, #tpu.memory_space<vmem>>, vector<512x256xbf16>
    %cst = arith.constant dense<0.000000e+00> : vector<56x256xf32>
    %6 = tpu.matmul %4, %5, %cst {dimension_numbers = #tpu.dot_dimension_numbers<[1], [0], [0], [1], [0, 0, 1, 1], [], []>} : vector<56x512xbf16>, vector<512x256xbf16>, vector<56x256xf32> -> vector<56x256xf32>
    %7 = arith.addf %3, %6 : vector<56x256xf32>
    %c0_6 = arith.constant 0 : index
    %c0_7 = arith.constant 0 : index
    %8 = vector.load %arg6[%c0_6, %c0_7] : memref<56x256xf32, #tpu.memory_space<vmem>>, vector<56x256xf32>
    tpu.vector_store %arg6[%c0_6, %c0_7], %7 {strides = array<i32>} : memref<56x256xf32, #tpu.memory_space<vmem>>, vector<56x256xf32>,
    %c0_i32_8 = arith.constant 0 : i32
    %9 = arith.cmpi eq, %arg1, %c0_i32_8 : i32
    %10 = arith.extui %9 : i1 to i32
    %c0_i32_9 = arith.constant 0 : i32
    %11 = arith.cmpi ne, %10, %c0_i32_9 : i32
    scf.if %11 {
      %c0_10 = arith.constant 0 : index
      %c0_11 = arith.constant 0 : index
      %12 = vector.load %arg6[%c0_10, %c0_11] : memref<56x256xf32, #tpu.memory_space<vmem>>, vector<56x256xf32>
      %c0_12 = arith.constant 0 : index
      %c0_13 = arith.constant 0 : index
      %13 = vector.load %arg4[%c0_12, %c0_13] : memref<1x256xf32, #tpu.memory_space<vmem>>, vector<1x256xf32>
      %14 = vector.broadcast %13 : vector<1x256xf32> to vector<56x256xf32>
      %15 = arith.addf %12, %14 : vector<56x256xf32>
      %cst_14 = arith.constant 0.000000e+00 : f32
      %16 = vector.broadcast %cst_14 : f32 to vector<56x256xf32>
      %17 = arith.maximumf %15, %16 : vector<56x256xf32>
      %c0_15 = arith.constant 0 : index
      %c0_16 = arith.constant 0 : index
      %18 = vector.load %arg5[%c0_15, %c0_16] : memref<56x256xf32, #tpu.memory_space<vmem>>, vector<56x256xf32>
      tpu.vector_store %arg5[%c0_15, %c0_16], %17 {strides = array<i32>} : memref<56x256xf32, #tpu.memory_space<vmem>>, vector<56x256xf32>,
    } else {
    }
    return
  }
  func.func @transform_0(%arg0: i32, %arg1: i32) -> (i32, i32) {
    %c0_i32 = arith.constant 0 : i32
    return %arg0, %arg1 : i32, i32
  }
  func.func @transform_1(%arg0: i32, %arg1: i32) -> (i32, i32) {
    %c0_i32 = arith.constant 0 : i32
    %c0_i32_0 = arith.constant 0 : i32
    return %arg1, %c0_i32 : i32, i32
  }
  func.func @transform_2(%arg0: i32, %arg1: i32) -> (i32, i32) {
    %c0_i32 = arith.constant 0 : i32
    %c0_i32_0 = arith.constant 0 : i32
    %c0_i32_1 = arith.constant 0 : i32
    return %c0_i32, %c0_i32_0 : i32, i32
  }
  func.func @transform_3(%arg0: i32, %arg1: i32) -> (i32, i32) {
    %c0_i32 = arith.constant 0 : i32
    %c0_i32_0 = arith.constant 0 : i32
    return %arg0, %c0_i32 : i32, i32
  }
}

module attributes {stable_mosaic.version = 11 : i64} {
  func.func @_matmul_bias_act_kernel(%arg0: i32, %arg1: i32, %arg2: memref<168x256xbf16, #tpu.memory_space<vmem>>, %arg3: memref<256x128xbf16, #tpu.memory_space<vmem>>, %arg4: memref<1x128xf32, #tpu.memory_space<vmem>>, %arg5: memref<168x128xf32, #tpu.memory_space<vmem>>, %arg6: memref<168x128xf32, #tpu.memory_space<vmem>>) attributes {dimension_semantics = [#tpu.dimension_semantics<parallel>, #tpu.dimension_semantics<arbitrary>], iteration_bounds = array<i64: 1, 1>, scalar_prefetch = 0 : i64, scratch_operands = 1 : i64, tpu.core_type = #tpu.core_type<tc>, window_params = [{transform_indices = @transform_0, window_bounds = array<i64: 168, 256>}, {transform_indices = @transform_1, window_bounds = array<i64: 256, 128>}, {pipeline_mode = #tpu.pipeline_mode<synchronous>, transform_indices = @transform_2, window_bounds = array<i64: 1, 128>}, {transform_indices = @transform_3, window_bounds = array<i64: 168, 128>}]} {
    %c0_i32 = arith.constant 0 : i32
    %0 = arith.cmpi eq, %arg1, %c0_i32 : i32
    %1 = arith.extui %0 : i1 to i32
    %c0_i32_0 = arith.constant 0 : i32
    %2 = arith.cmpi ne, %1, %c0_i32_0 : i32
    scf.if %2 {
      %cst_10 = arith.constant 0.000000e+00 : f32
      %12 = vector.broadcast %cst_10 : f32 to vector<168x128xf32>
      %c0_11 = arith.constant 0 : index
      %c0_12 = arith.constant 0 : index
      %13 = vector.load %arg6[%c0_11, %c0_12] : memref<168x128xf32, #tpu.memory_space<vmem>>, vector<168x128xf32>
      tpu.vector_store %arg6[%c0_11, %c0_12], %12 {strides = array<i32>} : memref<168x128xf32, #tpu.memory_space<vmem>>, vector<168x128xf32>,
    } else {
    }
    %c0 = arith.constant 0 : index
    %c0_1 = arith.constant 0 : index
    %3 = vector.load %arg6[%c0, %c0_1] : memref<168x128xf32, #tpu.memory_space<vmem>>, vector<168x128xf32>
    %c0_2 = arith.constant 0 : index
    %c0_3 = arith.constant 0 : index
    %4 = vector.load %arg2[%c0_2, %c0_3] : memref<168x256xbf16, #tpu.memory_space<vmem>>, vector<168x256xbf16>
    %c0_4 = arith.constant 0 : index
    %c0_5 = arith.constant 0 : index
    %5 = vector.load %arg3[%c0_4, %c0_5] : memref<256x128xbf16, #tpu.memory_space<vmem>>, vector<256x128xbf16>
    %cst = arith.constant dense<0.000000e+00> : vector<168x128xf32>
    %6 = tpu.matmul %4, %5, %cst {dimension_numbers = #tpu.dot_dimension_numbers<[1], [0], [0], [1], [0, 0, 1, 1], [], []>} : vector<168x256xbf16>, vector<256x128xbf16>, vector<168x128xf32> -> vector<168x128xf32>
    %7 = arith.addf %3, %6 : vector<168x128xf32>
    %c0_6 = arith.constant 0 : index
    %c0_7 = arith.constant 0 : index
    %8 = vector.load %arg6[%c0_6, %c0_7] : memref<168x128xf32, #tpu.memory_space<vmem>>, vector<168x128xf32>
    tpu.vector_store %arg6[%c0_6, %c0_7], %7 {strides = array<i32>} : memref<168x128xf32, #tpu.memory_space<vmem>>, vector<168x128xf32>,
    %c0_i32_8 = arith.constant 0 : i32
    %9 = arith.cmpi eq, %arg1, %c0_i32_8 : i32
    %10 = arith.extui %9 : i1 to i32
    %c0_i32_9 = arith.constant 0 : i32
    %11 = arith.cmpi ne, %10, %c0_i32_9 : i32
    scf.if %11 {
      %c0_10 = arith.constant 0 : index
      %c0_11 = arith.constant 0 : index
      %12 = vector.load %arg6[%c0_10, %c0_11] : memref<168x128xf32, #tpu.memory_space<vmem>>, vector<168x128xf32>
      %c0_12 = arith.constant 0 : index
      %c0_13 = arith.constant 0 : index
      %13 = vector.load %arg4[%c0_12, %c0_13] : memref<1x128xf32, #tpu.memory_space<vmem>>, vector<1x128xf32>
      %14 = vector.broadcast %13 : vector<1x128xf32> to vector<168x128xf32>
      %15 = arith.addf %12, %14 : vector<168x128xf32>
      %cst_14 = arith.constant 0.000000e+00 : f32
      %16 = vector.broadcast %cst_14 : f32 to vector<168x128xf32>
      %17 = arith.subf %16, %15 : vector<168x128xf32>
      %18 = math.exp %17 : vector<168x128xf32>
      %cst_15 = arith.constant 1.000000e+00 : f32
      %19 = vector.broadcast %cst_15 : f32 to vector<168x128xf32>
      %20 = arith.addf %19, %18 : vector<168x128xf32>
      %cst_16 = arith.constant 1.000000e+00 : f32
      %21 = vector.broadcast %cst_16 : f32 to vector<168x128xf32>
      %22 = arith.divf %21, %20 : vector<168x128xf32>
      %c0_17 = arith.constant 0 : index
      %c0_18 = arith.constant 0 : index
      %23 = vector.load %arg5[%c0_17, %c0_18] : memref<168x128xf32, #tpu.memory_space<vmem>>, vector<168x128xf32>
      tpu.vector_store %arg5[%c0_17, %c0_18], %22 {strides = array<i32>} : memref<168x128xf32, #tpu.memory_space<vmem>>, vector<168x128xf32>,
    } else {
    }
    return
  }
  func.func @transform_0(%arg0: i32, %arg1: i32) -> (i32, i32) {
    %c0_i32 = arith.constant 0 : i32
    return %arg0, %arg1 : i32, i32
  }
  func.func @transform_1(%arg0: i32, %arg1: i32) -> (i32, i32) {
    %c0_i32 = arith.constant 0 : i32
    %c0_i32_0 = arith.constant 0 : i32
    return %arg1, %c0_i32 : i32, i32
  }
  func.func @transform_2(%arg0: i32, %arg1: i32) -> (i32, i32) {
    %c0_i32 = arith.constant 0 : i32
    %c0_i32_0 = arith.constant 0 : i32
    %c0_i32_1 = arith.constant 0 : i32
    return %c0_i32, %c0_i32_0 : i32, i32
  }
  func.func @transform_3(%arg0: i32, %arg1: i32) -> (i32, i32) {
    %c0_i32 = arith.constant 0 : i32
    %c0_i32_0 = arith.constant 0 : i32
    return %arg0, %c0_i32 : i32, i32
  }
}

</mosaic_0001>

<llo_original>
// kernel: conv_autoencoder_forward.4
$region0: #{conv_autoencoder_forward.4}
  #allocation0 [shape = 'u32[]', space=smem, size = 0x4, offset = 0x4, fixed_abs, tag = 'smem constant byte address 0x4 - core index']
  #allocation1 [shape = 'u32[144,128]{1,0:T(1,128)}', space=vmem, size = 0x12000, scoped, tag = 'internal scratch']
  #allocation2 [shape = 'f32[128,128]{1,0:T(8,128)}', space=vmem, size = 0x10000, scoped, tag = 'scratch operand']
  %s0 = inlined_call_operand.vmem [shape: bf16[128,32], index: 0, kind: input, shape index: {}]
  %s1 = inlined_call_operand.vmem [shape: bf16[32,128], index: 1, kind: input, shape index: {}]
  %s2 = inlined_call_operand.vmem [shape: f32[1,128], index: 2, kind: input, shape index: {}]
  %s3 = inlined_call_operand.vmem [shape: f32[128,128], index: 3, kind: output, shape index: {}]
  %s4 = sld [smem:[#allocation0]]
  $region30: #{conv_autoencoder_forward.4} parent=0
    _
  %s6 = ssub.s32 1, %s4
  %s7 = scalar_select 0, %s6, %s4
  // Predicated region
  $region2: #{conv_autoencoder_forward.4} parent=0 // pred_check
    _
  $region3: #{conv_autoencoder_forward.4} parent=0 // pred_check_branch
    %9 = sbr.rel (0) target = $region5
  $region4: #{conv_autoencoder_forward.4} parent=0 // pred_region
    _
  $region5: #{conv_autoencoder_forward.4} parent=0 // pred_fallthru
    _
  // Predicated region
  $region6: #{conv_autoencoder_forward.4} parent=0 // pred_check
    _
  $region7: #{conv_autoencoder_forward.4} parent=0 // pred_check_branch
    %11 = sbr.rel (0) target = $region9
  $region8: #{conv_autoencoder_forward.4} parent=0 // pred_region
    _
  $region9: #{conv_autoencoder_forward.4} parent=0 // pred_fallthru
    _
  // Predicated region
  $region10: #{conv_autoencoder_forward.4} parent=0 // pred_check
    _
  $region11: #{conv_autoencoder_forward.4} parent=0 // pred_check_branch
    %13 = sbr.rel (0) target = $region13
  $region12: #{conv_autoencoder_forward.4} parent=0 // pred_region
    _
  $region13: #{conv_autoencoder_forward.4} parent=0 // pred_fallthru
    _
  %p15 = scmp.eq.s32.totalorder 0, 0
  // Predicated region
  $region14: #{conv_autoencoder_forward.4} parent=0 // pred_check
    %p16 = pneg %p15
  $region15: #{conv_autoencoder_forward.4} parent=0 // pred_check_branch
    %18 = sbr.rel (%p16) target = $region17
  $region16: #{conv_autoencoder_forward.4} parent=0 // pred_region
    %19 = vst [vmem:[#allocation2] sm:$0xff] 0.0
    %20 = vst [vmem:[#allocation2 + $0x8] sm:$0xff] 0.0
    %21 = vst [vmem:[#allocation2 + $0x10] sm:$0xff] 0.0
    %22 = vst [vmem:[#allocation2 + $0x18] sm:$0xff] 0.0
    %23 = vst [vmem:[#allocation2 + $0x20] sm:$0xff] 0.0
    %24 = vst [vmem:[#allocation2 + $0x28] sm:$0xff] 0.0
    %25 = vst [vmem:[#allocation2 + $0x30] sm:$0xff] 0.0
    %26 = vst [vmem:[#allocation2 + $0x38] sm:$0xff] 0.0
    %27 = vst [vmem:[#allocation2 + $0x40] sm:$0xff] 0.0
    %28 = vst [vmem:[#allocation2 + $0x48] sm:$0xff] 0.0
    %29 = vst [vmem:[#allocation2 + $0x50] sm:$0xff] 0.0
    %30 = vst [vmem:[#allocation2 + $0x58] sm:$0xff] 0.0
    %31 = vst [vmem:[#allocation2 + $0x60] sm:$0xff] 0.0
    %32 = vst [vmem:[#allocation2 + $0x68] sm:$0xff] 0.0
    %33 = vst [vmem:[#allocation2 + $0x70] sm:$0xff] 0.0
    %34 = vst [vmem:[#allocation2 + $0x78] sm:$0xff] 0.0
  $region17: #{conv_autoencoder_forward.4} parent=0 // pred_fallthru
    _
  %v35 = vld [vmem:[#allocation2] sm:$0xff]
  %v36 = vld [vmem:[#allocation2 + $0x8] sm:$0xff]
  %v37 = vld [vmem:[#allocation2 + $0x10] sm:$0xff]
  %v38 = vld [vmem:[#allocation2 + $0x18] sm:$0xff]
  %v39 = vld [vmem:[#allocation2 + $0x20] sm:$0xff]
  %v40 = vld [vmem:[#allocation2 + $0x28] sm:$0xff]
  %v41 = vld [vmem:[#allocation2 + $0x30] sm:$0xff]
  %v42 = vld [vmem:[#allocation2 + $0x38] sm:$0xff]
  %v43 = vld [vmem:[#allocation2 + $0x40] sm:$0xff]
  %v44 = vld [vmem:[#allocation2 + $0x48] sm:$0xff]
  %v45 = vld [vmem:[#allocation2 + $0x50] sm:$0xff]
  %v46 = vld [vmem:[#allocation2 + $0x58] sm:$0xff]
  %v47 = vld [vmem:[#allocation2 + $0x60] sm:$0xff]
  %v48 = vld [vmem:[#allocation2 + $0x68] sm:$0xff]
  %v49 = vld [vmem:[#allocation2 + $0x70] sm:$0xff]
  %v50 = vld [vmem:[#allocation2 + $0x78] sm:$0xff]
  %v51 = vld [vmem:[%s0] sm:$0xf]
  %v52 = vld [vmem:[%s0 + $0x4] sm:$0xf]
  %v53 = vld [vmem:[%s0 + $0x8] sm:$0xf]
  %v54 = vld [vmem:[%s0 + $0xc] sm:$0xf]
  %v55 = vld [vmem:[%s0 + $0x10] sm:$0xf]
  %v56 = vld [vmem:[%s0 + $0x14] sm:$0xf]
  %v57 = vld [vmem:[%s0 + $0x18] sm:$0xf]
  %v58 = vld [vmem:[%s0 + $0x1c] sm:$0xf]
  %v59 = vld [vmem:[%s0 + $0x20] sm:$0xf]
  %v60 = vld [vmem:[%s0 + $0x24] sm:$0xf]
  %v61 = vld [vmem:[%s0 + $0x28] sm:$0xf]
  %v62 = vld [vmem:[%s0 + $0x2c] sm:$0xf]
  %v63 = vld [vmem:[%s0 + $0x30] sm:$0xf]
  %v64 = vld [vmem:[%s0 + $0x34] sm:$0xf]
  %v65 = vld [vmem:[%s0 + $0x38] sm:$0xf]
  %v66 = vld [vmem:[%s0 + $0x3c] sm:$0xf]
  %v67 = vld [vmem:[%s1] sm:$0xf]
  %v68 = vld [vmem:[%s1 + $0x4] sm:$0xf]
  %v69 = vld [vmem:[%s1 + $0x8] sm:$0xf]
  %v70 = vld [vmem:[%s1 + $0xc] sm:$0xf]
  %v87 = vunpack.c.l.b16 %v51
  %v88 = vunpack.c.l.b16 %v52
  %v89 = vunpack.c.l.b16 %v53
  %v90 = vunpack.c.l.b16 %v54
  %v91 = vunpack.c.l.b16 %v55
  %v92 = vunpack.c.l.b16 %v56
  %v93 = vunpack.c.l.b16 %v57
  %v94 = vunpack.c.l.b16 %v58
  %v95 = vunpack.c.l.b16 %v59
  %v96 = vunpack.c.l.b16 %v60
  %v97 = vunpack.c.l.b16 %v61
  %v98 = vunpack.c.l.b16 %v62
  %v99 = vunpack.c.l.b16 %v63
  %v100 = vunpack.c.l.b16 %v64
  %v101 = vunpack.c.l.b16 %v65
  %v102 = vunpack.c.l.b16 %v66
  %v103 = vpack.c.b16 %v88, %v87
  %v104 = vpack.c.b16 %v90, %v89
  %v105 = vpack.c.b16 %v92, %v91
  %v106 = vpack.c.b16 %v94, %v93
  %v107 = vpack.c.b16 %v96, %v95
  %v108 = vpack.c.b16 %v98, %v97
  %v109 = vpack.c.b16 %v100, %v99
  %v110 = vpack.c.b16 %v102, %v101
  %v115 = vunpack.c.l.b16 %v67
  %v116 = vunpack.c.l.b16 %v68
  %v117 = vunpack.c.l.b16 %v69
  %v118 = vunpack.c.l.b16 %v70
  %v119 = vpack.c.b16 %v116, %v115
  %v120 = vpack.c.b16 %v118, %v117
  %vm123 = vcmask 261120
  %v125 = vsel %vm123, %v103, 0
  %v128 = vsel %vm123, %v104, 0
  %v131 = vsel %vm123, %v105, 0
  %v134 = vsel %vm123, %v106, 0
  %v137 = vsel %vm123, %v107, 0
  %v140 = vsel %vm123, %v108, 0
  %v143 = vsel %vm123, %v109, 0
  %v146 = vsel %vm123, %v110, 0
  %148 = vmatprep.subr.bf16.mxu0 0
  %149 = vmatpush1.bf16.msra.mxu0 0
  %150 = vmatprep.subr.bf16.mxu0 0
  %151 = vmatpush1.bf16.msra.mxu0 0
  %152 = vmatprep.subr.bf16.mxu0 0
  %153 = vmatpush1.bf16.msra.mxu0 0
  %154 = vmatprep.subr.bf16.mxu0 0
  %155 = vmatpush1.bf16.msra.mxu0 0
  %156 = vmatprep.subr.bf16.mxu0 0
  %157 = vmatpush1.bf16.msra.mxu0 0
  %158 = vmatprep.subr.bf16.mxu0 0
  %159 = vmatpush1.bf16.msra.mxu0 0
  %160 = vmatprep.subr.bf16.mxu0 0
  %161 = vmatpush1.bf16.msra.mxu0 %v120
  %162 = vmatprep.subr.bf16.mxu0 0
  %163 = vmatpush1.bf16.msra.mxu0 %v119
  %164 = vmatprep.subr.bf16.mxu0 0
  %165 = vmatpush2.bf16.msra.mxu0 0
  %166 = vmatprep.subr.bf16.mxu0 0
  %167 = vmatpush2.bf16.msra.mxu0 0
  %168 = vmatprep.subr.bf16.mxu0 0
  %169 = vmatpush2.bf16.msra.mxu0 0
  %170 = vmatprep.subr.bf16.mxu0 0
  %171 = vmatpush2.bf16.msra.mxu0 0
  %172 = vmatprep.subr.bf16.mxu0 0
  %173 = vmatpush2.bf16.msra.mxu0 0
  %174 = vmatprep.subr.bf16.mxu0 0
  %175 = vmatpush2.bf16.msra.mxu0 0
  %176 = vmatprep.subr.bf16.mxu0 0
  %177 = vmatpush2.bf16.msra.mxu0 0
  %178 = vmatprep.subr.bf16.mxu0 0
  %179 = vmatpush2.bf16.msra.mxu0 0
  %180 = vmatprep.mubr.bf16.mxu0 0
  %181 = vmatmul.mubr.bf16.gmra.mxu0 %v125
  %v182 = vpop.f32.mrf.mxu0
  %v183 = vadd.f32 0.0, %v182
  %v184 = vpop.f32.mrf.mxu0
  %v185 = vpop.f32.mrf.mxu0
  %v186 = vadd.f32 0.0, %v185
  %v187 = vpop.f32.mrf.mxu0
  %188 = vmatprep.mubr.bf16.mxu0 0
  %189 = vmatmul.mubr.bf16.gmra.mxu0 %v128
  %v190 = vpop.f32.mrf.mxu0
  %v191 = vadd.f32 0.0, %v190
  %v192 = vpop.f32.mrf.mxu0
  %v193 = vpop.f32.mrf.mxu0
  %v194 = vadd.f32 0.0, %v193
  %v195 = vpop.f32.mrf.mxu0
  %196 = vmatprep.mubr.bf16.mxu0 0
  %197 = vmatmul.mubr.bf16.gmra.mxu0 %v131
  %v198 = vpop.f32.mrf.mxu0
  %v199 = vadd.f32 0.0, %v198
  %v200 = vpop.f32.mrf.mxu0
  %v201 = vpop.f32.mrf.mxu0
  %v202 = vadd.f32 0.0, %v201
  %v203 = vpop.f32.mrf.mxu0
  %204 = vmatprep.mubr.bf16.mxu0 0
  %205 = vmatmul.mubr.bf16.gmra.mxu0 %v134
  %v206 = vpop.f32.mrf.mxu0
  %v207 = vadd.f32 0.0, %v206
  %v208 = vpop.f32.mrf.mxu0
  %v209 = vpop.f32.mrf.mxu0
  %v210 = vadd.f32 0.0, %v209
  %v211 = vpop.f32.mrf.mxu0
  %212 = vmatprep.mubr.bf16.mxu0 0
  %213 = vmatmul.mubr.bf16.gmra.mxu0 %v137
  %v214 = vpop.f32.mrf.mxu0
  %v215 = vadd.f32 0.0, %v214
  %v216 = vpop.f32.mrf.mxu0
  %v217 = vpop.f32.mrf.mxu0
  %v218 = vadd.f32 0.0, %v217
  %v219 = vpop.f32.mrf.mxu0
  %220 = vmatprep.mubr.bf16.mxu0 0
  %221 = vmatmul.mubr.bf16.gmra.mxu0 %v140
  %v222 = vpop.f32.mrf.mxu0
  %v223 = vadd.f32 0.0, %v222
  %v224 = vpop.f32.mrf.mxu0
  %v225 = vpop.f32.mrf.mxu0
  %v226 = vadd.f32 0.0, %v225
  %v227 = vpop.f32.mrf.mxu0
  %228 = vmatprep.mubr.bf16.mxu0 0
  %229 = vmatmul.mubr.bf16.gmra.mxu0 %v143
  %v230 = vpop.f32.mrf.mxu0
  %v231 = vadd.f32 0.0, %v230
  %v232 = vpop.f32.mrf.mxu0
  %v233 = vpop.f32.mrf.mxu0
  %v234 = vadd.f32 0.0, %v233
  %v235 = vpop.f32.mrf.mxu0
  %236 = vmatprep.mubr.bf16.mxu0 0
  %237 = vmatmul.mubr.bf16.gmra.mxu0 %v146
  %v238 = vpop.f32.mrf.mxu0
  %v239 = vadd.f32 0.0, %v238
  %v240 = vpop.f32.mrf.mxu0
  %v241 = vpop.f32.mrf.mxu0
  %v242 = vadd.f32 0.0, %v241
  %v243 = vpop.f32.mrf.mxu0
  %244 = vdwg.mxu0
  %v245 = vadd.f32 %v35, %v183
  %v246 = vadd.f32 %v36, %v186
  %v247 = vadd.f32 %v37, %v191
  %v248 = vadd.f32 %v38, %v194
  %v249 = vadd.f32 %v39, %v199
  %v250 = vadd.f32 %v40, %v202
  %v251 = vadd.f32 %v41, %v207
  %v252 = vadd.f32 %v42, %v210
  %v253 = vadd.f32 %v43, %v215
  %v254 = vadd.f32 %v44, %v218
  %v255 = vadd.f32 %v45, %v223
  %v256 = vadd.f32 %v46, %v226
  %v257 = vadd.f32 %v47, %v231
  %v258 = vadd.f32 %v48, %v234
  %v259 = vadd.f32 %v49, %v239
  %v260 = vadd.f32 %v50, %v242
  %261 = vst [vmem:[#allocation2] sm:$0xff] %v245
  %262 = vst [vmem:[#allocation2 + $0x8] sm:$0xff] %v246
  %263 = vst [vmem:[#allocation2 + $0x10] sm:$0xff] %v247
  %264 = vst [vmem:[#allocation2 + $0x18] sm:$0xff] %v248
  %265 = vst [vmem:[#allocation2 + $0x20] sm:$0xff] %v249
  %266 = vst [vmem:[#allocation2 + $0x28] sm:$0xff] %v250
  %267 = vst [vmem:[#allocation2 + $0x30] sm:$0xff] %v251
  %268 = vst [vmem:[#allocation2 + $0x38] sm:$0xff] %v252
  %269 = vst [vmem:[#allocation2 + $0x40] sm:$0xff] %v253
  %270 = vst [vmem:[#allocation2 + $0x48] sm:$0xff] %v254
  %271 = vst [vmem:[#allocation2 + $0x50] sm:$0xff] %v255
  %272 = vst [vmem:[#allocation2 + $0x58] sm:$0xff] %v256
  %273 = vst [vmem:[#allocation2 + $0x60] sm:$0xff] %v257
  %274 = vst [vmem:[#allocation2 + $0x68] sm:$0xff] %v258
  %275 = vst [vmem:[#allocation2 + $0x70] sm:$0xff] %v259
  %276 = vst [vmem:[#allocation2 + $0x78] sm:$0xff] %v260
  // Predicated region
  $region18: #{conv_autoencoder_forward.4} parent=0 // pred_check
    %p277 = pneg %p15
  $region19: #{conv_autoencoder_forward.4} parent=0 // pred_check_branch
    %279 = sbr.rel (%p277) target = $region21
  $region20: #{conv_autoencoder_forward.4} parent=0 // pred_region
    %v280 = vld [vmem:[#allocation2] sm:$0xff]
    %v281 = vld [vmem:[#allocation2 + $0x8] sm:$0xff]
    %v282 = vld [vmem:[#allocation2 + $0x10] sm:$0xff]
    %v283 = vld [vmem:[#allocation2 + $0x18] sm:$0xff]
    %v284 = vld [vmem:[#allocation2 + $0x20] sm:$0xff]
    %v285 = vld [vmem:[#allocation2 + $0x28] sm:$0xff]
    %v286 = vld [vmem:[#allocation2 + $0x30] sm:$0xff]
    %v287 = vld [vmem:[#allocation2 + $0x38] sm:$0xff]
    %v288 = vld [vmem:[#allocation2 + $0x40] sm:$0xff]
    %v289 = vld [vmem:[#allocation2 + $0x48] sm:$0xff]
    %v290 = vld [vmem:[#allocation2 + $0x50] sm:$0xff]
    %v291 = vld [vmem:[#allocation2 + $0x58] sm:$0xff]
    %v292 = vld [vmem:[#allocation2 + $0x60] sm:$0xff]
    %v293 = vld [vmem:[#allocation2 + $0x68] sm:$0xff]
    %v294 = vld [vmem:[#allocation2 + $0x70] sm:$0xff]
    %v295 = vld [vmem:[#allocation2 + $0x78] sm:$0xff]
    %v296 = vld [vmem:[%s2] sm:$0x1]
    %v298 = vlaneseq
    %v299 = vshrl.u32 %v298, 7
    %v300 = vsub.s32 0, %v299
    %v301 = vrot.slane %v296, %v300
    %v303 = vadd.f32 %v280, %v301
    %v304 = vadd.f32 %v281, %v301
    %v305 = vadd.f32 %v282, %v301
    %v306 = vadd.f32 %v283, %v301
    %v307 = vadd.f32 %v284, %v301
    %v308 = vadd.f32 %v285, %v301
    %v309 = vadd.f32 %v286, %v301
    %v310 = vadd.f32 %v287, %v301
    %v311 = vadd.f32 %v288, %v301
    %v312 = vadd.f32 %v289, %v301
    %v313 = vadd.f32 %v290, %v301
    %v314 = vadd.f32 %v291, %v301
    %v315 = vadd.f32 %v292, %v301
    %v316 = vadd.f32 %v293, %v301
    %v317 = vadd.f32 %v294, %v301
    %v318 = vadd.f32 %v295, %v301
    %v319 = vmax.f32 %v303, 0.0
    %v320 = vmax.f32 %v304, 0.0
    %v321 = vmax.f32 %v305, 0.0
    %v322 = vmax.f32 %v306, 0.0
    %v323 = vmax.f32 %v307, 0.0
    %v324 = vmax.f32 %v308, 0.0
    %v325 = vmax.f32 %v309, 0.0
    %v326 = vmax.f32 %v310, 0.0
    %v327 = vmax.f32 %v311, 0.0
    %v328 = vmax.f32 %v312, 0.0
    %v329 = vmax.f32 %v313, 0.0
    %v330 = vmax.f32 %v314, 0.0
    %v331 = vmax.f32 %v315, 0.0
    %v332 = vmax.f32 %v316, 0.0
    %v333 = vmax.f32 %v317, 0.0
    %v334 = vmax.f32 %v318, 0.0
    %335 = vst [vmem:[%s3] sm:$0xff] %v319
    %336 = vst [vmem:[%s3 + $0x8] sm:$0xff] %v320
    %337 = vst [vmem:[%s3 + $0x10] sm:$0xff] %v321
    %338 = vst [vmem:[%s3 + $0x18] sm:$0xff] %v322
    %339 = vst [vmem:[%s3 + $0x20] sm:$0xff] %v323
    %340 = vst [vmem:[%s3 + $0x28] sm:$0xff] %v324
    %341 = vst [vmem:[%s3 + $0x30] sm:$0xff] %v325
    %342 = vst [vmem:[%s3 + $0x38] sm:$0xff] %v326
    %343 = vst [vmem:[%s3 + $0x40] sm:$0xff] %v327
    %344 = vst [vmem:[%s3 + $0x48] sm:$0xff] %v328
    %345 = vst [vmem:[%s3 + $0x50] sm:$0xff] %v329
    %346 = vst [vmem:[%s3 + $0x58] sm:$0xff] %v330
    %347 = vst [vmem:[%s3 + $0x60] sm:$0xff] %v331
    %348 = vst [vmem:[%s3 + $0x68] sm:$0xff] %v332
    %349 = vst [vmem:[%s3 + $0x70] sm:$0xff] %v333
    %350 = vst [vmem:[%s3 + $0x78] sm:$0xff] %v334
  $region21: #{conv_autoencoder_forward.4} parent=0 // pred_fallthru
    _
  // Predicated region
  $region22: #{conv_autoencoder_forward.4} parent=0 // pred_check
    _
  $region23: #{conv_autoencoder_forward.4} parent=0 // pred_check_branch
    %352 = sbr.rel (0) target = $region25
  $region24: #{conv_autoencoder_forward.4} parent=0 // pred_region
    _
  $region25: #{conv_autoencoder_forward.4} parent=0 // pred_fallthru
    _
  // Predicated region
  $region26: #{conv_autoencoder_forward.4} parent=0 // pred_check
    _
  $region27: #{conv_autoencoder_forward.4} parent=0 // pred_check_branch
    %354 = sbr.rel (0) target = $region29
  $region28: #{conv_autoencoder_forward.4} parent=0 // pred_region
    _
  $region29: #{conv_autoencoder_forward.4} parent=0 // pred_fallthru
    _

// kernel: conv_autoencoder_forward.5
$region0: #{conv_autoencoder_forward.5}
  #allocation0 [shape = 'u32[]', space=smem, size = 0x4, offset = 0x4, fixed_abs, tag = 'smem constant byte address 0x4 - core index']
  #allocation1 [shape = 'u32[144,128]{1,0:T(1,128)}', space=vmem, size = 0x12000, scoped, tag = 'internal scratch']
  #allocation2 [shape = 'f32[32,128]{1,0:T(8,128)}', space=vmem, size = 0x4000, scoped, tag = 'scratch operand']
  %s0 = inlined_call_operand.vmem [shape: bf16[32,576], index: 0, kind: input, shape index: {}]
  %s1 = inlined_call_operand.vmem [shape: bf16[576,128], index: 1, kind: input, shape index: {}]
  %s2 = inlined_call_operand.vmem [shape: f32[1,128], index: 2, kind: input, shape index: {}]
  %s3 = inlined_call_operand.vmem [shape: f32[32,128], index: 3, kind: output, shape index: {}]
  %s4 = sld [smem:[#allocation0]]
  $region30: #{conv_autoencoder_forward.5} parent=0
    _
  %s6 = ssub.s32 1, %s4
  %s7 = scalar_select 0, %s6, %s4
  // Predicated region
  $region2: #{conv_autoencoder_forward.5} parent=0 // pred_check
    _
  $region3: #{conv_autoencoder_forward.5} parent=0 // pred_check_branch
    %9 = sbr.rel (0) target = $region5
  $region4: #{conv_autoencoder_forward.5} parent=0 // pred_region
    _
  $region5: #{conv_autoencoder_forward.5} parent=0 // pred_fallthru
    _
  // Predicated region
  $region6: #{conv_autoencoder_forward.5} parent=0 // pred_check
    _
  $region7: #{conv_autoencoder_forward.5} parent=0 // pred_check_branch
    %11 = sbr.rel (0) target = $region9
  $region8: #{conv_autoencoder_forward.5} parent=0 // pred_region
    _
  $region9: #{conv_autoencoder_forward.5} parent=0 // pred_fallthru
    _
  // Predicated region
  $region10: #{conv_autoencoder_forward.5} parent=0 // pred_check
    _
  $region11: #{conv_autoencoder_forward.5} parent=0 // pred_check_branch
    %13 = sbr.rel (0) target = $region13
  $region12: #{conv_autoencoder_forward.5} parent=0 // pred_region
    _
  $region13: #{conv_autoencoder_forward.5} parent=0 // pred_fallthru
    _
  %p15 = scmp.eq.s32.totalorder 0, 0
  // Predicated region
  $region14: #{conv_autoencoder_forward.5} parent=0 // pred_check
    %p16 = pneg %p15
  $region15: #{conv_autoencoder_forward.5} parent=0 // pred_check_branch
    %18 = sbr.rel (%p16) target = $region17
  $region16: #{conv_autoencoder_forward.5} parent=0 // pred_region
    %19 = vst [vmem:[#allocation2] sm:$0xff] 0.0
    %20 = vst [vmem:[#allocation2 + $0x8] sm:$0xff] 0.0
    %21 = vst [vmem:[#allocation2 + $0x10] sm:$0xff] 0.0
    %22 = vst [vmem:[#allocation2 + $0x18] sm:$0xff] 0.0
  $region17: #{conv_autoencoder_forward.5} parent=0 // pred_fallthru
    _
  %v23 = vld [vmem:[#allocation2] sm:$0xff]
  %v24 = vld [vmem:[#allocation2 + $0x8] sm:$0xff]
  %v25 = vld [vmem:[#allocation2 + $0x10] sm:$0xff]
  %v26 = vld [vmem:[#allocation2 + $0x18] sm:$0xff]
  %v27 = vld [vmem:[%s0] sm:$0xff]
  %v28 = vld [vmem:[%s0 + $0x8] sm:$0xff]
  %v29 = vld [vmem:[%s0 + $0x10] sm:$0xf]
  %v30 = vld [vmem:[%s0 + $0x14] sm:$0xff]
  %v31 = vld [vmem:[%s0 + $0x1c] sm:$0xff]
  %v32 = vld [vmem:[%s0 + $0x24] sm:$0xf]
  %v33 = vld [vmem:[%s0 + $0x28] sm:$0xff]
  %v34 = vld [vmem:[%s0 + $0x30] sm:$0xff]
  %v35 = vld [vmem:[%s0 + $0x38] sm:$0xf]
  %v36 = vld [vmem:[%s0 + $0x3c] sm:$0xff]
  %v37 = vld [vmem:[%s0 + $0x44] sm:$0xff]
  %v38 = vld [vmem:[%s0 + $0x4c] sm:$0xf]
  %v39 = vld [vmem:[%s1] sm:$0xf]
  %v40 = vld [vmem:[%s1 + $0x4] sm:$0xf]
  %v41 = vld [vmem:[%s1 + $0x8] sm:$0xf]
  %v42 = vld [vmem:[%s1 + $0xc] sm:$0xf]
  %v43 = vld [vmem:[%s1 + $0x10] sm:$0xf]
  %v44 = vld [vmem:[%s1 + $0x14] sm:$0xf]
  %v45 = vld [vmem:[%s1 + $0x18] sm:$0xf]
  %v46 = vld [vmem:[%s1 + $0x1c] sm:$0xf]
  %v47 = vld [vmem:[%s1 + $0x20] sm:$0xf]
  %v48 = vld [vmem:[%s1 + $0x24] sm:$0xf]
  %v49 = vld [vmem:[%s1 + $0x28] sm:$0xf]
  %v50 = vld [vmem:[%s1 + $0x2c] sm:$0xf]
  %v51 = vld [vmem:[%s1 + $0x30] sm:$0xf]
  %v52 = vld [vmem:[%s1 + $0x34] sm:$0xf]
  %v53 = vld [vmem:[%s1 + $0x38] sm:$0xf]
  %v54 = vld [vmem:[%s1 + $0x3c] sm:$0xf]
  %v55 = vld [vmem:[%s1 + $0x40] sm:$0xf]
  %v56 = vld [vmem:[%s1 + $0x44] sm:$0xf]
  %v57 = vld [vmem:[%s1 + $0x48] sm:$0xf]
  %v58 = vld [vmem:[%s1 + $0x4c] sm:$0xf]
  %v59 = vld [vmem:[%s1 + $0x50] sm:$0xf]
  %v60 = vld [vmem:[%s1 + $0x54] sm:$0xf]
  %v61 = vld [vmem:[%s1 + $0x58] sm:$0xf]
  %v62 = vld [vmem:[%s1 + $0x5c] sm:$0xf]
  %v63 = vld [vmem:[%s1 + $0x60] sm:$0xf]
  %v64 = vld [vmem:[%s1 + $0x64] sm:$0xf]
  %v65 = vld [vmem:[%s1 + $0x68] sm:$0xf]
  %v66 = vld [vmem:[%s1 + $0x6c] sm:$0xf]
  %v67 = vld [vmem:[%s1 + $0x70] sm:$0xf]
  %v68 = vld [vmem:[%s1 + $0x74] sm:$0xf]
  %v69 = vld [vmem:[%s1 + $0x78] sm:$0xf]
  %v70 = vld [vmem:[%s1 + $0x7c] sm:$0xf]
  %v71 = vld [vmem:[%s1 + $0x80] sm:$0xf]
  %v72 = vld [vmem:[%s1 + $0x84] sm:$0xf]
  %v73 = vld [vmem:[%s1 + $0x88] sm:$0xf]
  %v74 = vld [vmem:[%s1 + $0x8c] sm:$0xf]
  %v75 = vld [vmem:[%s1 + $0x90] sm:$0xf]
  %v76 = vld [vmem:[%s1 + $0x94] sm:$0xf]
  %v77 = vld [vmem:[%s1 + $0x98] sm:$0xf]
  %v78 = vld [vmem:[%s1 + $0x9c] sm:$0xf]
  %v79 = vld [vmem:[%s1 + $0xa0] sm:$0xf]
  %v80 = vld [vmem:[%s1 + $0xa4] sm:$0xf]
  %v81 = vld [vmem:[%s1 + $0xa8] sm:$0xf]
  %v82 = vld [vmem:[%s1 + $0xac] sm:$0xf]
  %v83 = vld [vmem:[%s1 + $0xb0] sm:$0xf]
  %v84 = vld [vmem:[%s1 + $0xb4] sm:$0xf]
  %v85 = vld [vmem:[%s1 + $0xb8] sm:$0xf]
  %v86 = vld [vmem:[%s1 + $0xbc] sm:$0xf]
  %v87 = vld [vmem:[%s1 + $0xc0] sm:$0xf]
  %v88 = vld [vmem:[%s1 + $0xc4] sm:$0xf]
  %v89 = vld [vmem:[%s1 + $0xc8] sm:$0xf]
  %v90 = vld [vmem:[%s1 + $0xcc] sm:$0xf]
  %v91 = vld [vmem:[%s1 + $0xd0] sm:$0xf]
  %v92 = vld [vmem:[%s1 + $0xd4] sm:$0xf]
  %v93 = vld [vmem:[%s1 + $0xd8] sm:$0xf]
  %v94 = vld [vmem:[%s1 + $0xdc] sm:$0xf]
  %v95 = vld [vmem:[%s1 + $0xe0] sm:$0xf]
  %v96 = vld [vmem:[%s1 + $0xe4] sm:$0xf]
  %v97 = vld [vmem:[%s1 + $0xe8] sm:$0xf]
  %v98 = vld [vmem:[%s1 + $0xec] sm:$0xf]
  %v99 = vld [vmem:[%s1 + $0xf0] sm:$0xf]
  %v100 = vld [vmem:[%s1 + $0xf4] sm:$0xf]
  %v101 = vld [vmem:[%s1 + $0xf8] sm:$0xf]
  %v102 = vld [vmem:[%s1 + $0xfc] sm:$0xf]
  %v103 = vld [vmem:[%s1 + $0x100] sm:$0xf]
  %v104 = vld [vmem:[%s1 + $0x104] sm:$0xf]
  %v105 = vld [vmem:[%s1 + $0x108] sm:$0xf]
  %v106 = vld [vmem:[%s1 + $0x10c] sm:$0xf]
  %v107 = vld [vmem:[%s1 + $0x110] sm:$0xf]
  %v108 = vld [vmem:[%s1 + $0x114] sm:$0xf]
  %v109 = vld [vmem:[%s1 + $0x118] sm:$0xf]
  %v110 = vld [vmem:[%s1 + $0x11c] sm:$0xf]
  %v123 = vunpack.c.l.b16 %v27
  %v124 = vunpack.c.h.b16 %v27
  %v125 = vunpack.c.l.b16 %v28
  %v126 = vunpack.c.h.b16 %v28
  %v127 = vunpack.c.l.b16 %v29
  %v128 = vunpack.c.l.b16 %v30
  %v129 = vunpack.c.h.b16 %v30
  %v130 = vunpack.c.l.b16 %v31
  %v131 = vunpack.c.h.b16 %v31
  %v132 = vunpack.c.l.b16 %v32
  %v133 = vunpack.c.l.b16 %v33
  %v134 = vunpack.c.h.b16 %v33
  %v135 = vunpack.c.l.b16 %v34
  %v136 = vunpack.c.h.b16 %v34
  %v137 = vunpack.c.l.b16 %v35
  %v138 = vunpack.c.l.b16 %v36
  %v139 = vunpack.c.h.b16 %v36
  %v140 = vunpack.c.l.b16 %v37
  %v141 = vunpack.c.h.b16 %v37
  %v142 = vunpack.c.l.b16 %v38
  %v143 = vpack.c.b16 %v128, %v123
  %v144 = vpack.c.b16 %v129, %v124
  %v145 = vpack.c.b16 %v130, %v125
  %v146 = vpack.c.b16 %v131, %v126
  %v147 = vpack.c.b16 %v132, %v127
  %v148 = vpack.c.b16 %v138, %v133
  %v149 = vpack.c.b16 %v139, %v134
  %v150 = vpack.c.b16 %v140, %v135
  %v151 = vpack.c.b16 %v141, %v136
  %v152 = vpack.c.b16 %v142, %v137
  %v233 = vunpack.c.l.b16 %v39
  %v234 = vunpack.c.l.b16 %v40
  %v235 = vunpack.c.l.b16 %v41
  %v236 = vunpack.c.l.b16 %v42
  %v237 = vunpack.c.l.b16 %v43
  %v238 = vunpack.c.l.b16 %v44
  %v239 = vunpack.c.l.b16 %v45
  %v240 = vunpack.c.l.b16 %v46
  %v241 = vunpack.c.l.b16 %v47
  %v242 = vunpack.c.l.b16 %v48
  %v243 = vunpack.c.l.b16 %v49
  %v244 = vunpack.c.l.b16 %v50
  %v245 = vunpack.c.l.b16 %v51
  %v246 = vunpack.c.l.b16 %v52
  %v247 = vunpack.c.l.b16 %v53
  %v248 = vunpack.c.l.b16 %v54
  %v249 = vunpack.c.l.b16 %v55
  %v250 = vunpack.c.l.b16 %v56
  %v251 = vunpack.c.l.b16 %v57
  %v252 = vunpack.c.l.b16 %v58
  %v253 = vunpack.c.l.b16 %v59
  %v254 = vunpack.c.l.b16 %v60
  %v255 = vunpack.c.l.b16 %v61
  %v256 = vunpack.c.l.b16 %v62
  %v257 = vunpack.c.l.b16 %v63
  %v258 = vunpack.c.l.b16 %v64
  %v259 = vunpack.c.l.b16 %v65
  %v260 = vunpack.c.l.b16 %v66
  %v261 = vunpack.c.l.b16 %v67
  %v262 = vunpack.c.l.b16 %v68
  %v263 = vunpack.c.l.b16 %v69
  %v264 = vunpack.c.l.b16 %v70
  %v265 = vunpack.c.l.b16 %v71
  %v266 = vunpack.c.l.b16 %v72
  %v267 = vunpack.c.l.b16 %v73
  %v268 = vunpack.c.l.b16 %v74
  %v269 = vunpack.c.l.b16 %v75
  %v270 = vunpack.c.l.b16 %v76
  %v271 = vunpack.c.l.b16 %v77
  %v272 = vunpack.c.l.b16 %v78
  %v273 = vunpack.c.l.b16 %v79
  %v274 = vunpack.c.l.b16 %v80
  %v275 = vunpack.c.l.b16 %v81
  %v276 = vunpack.c.l.b16 %v82
  %v277 = vunpack.c.l.b16 %v83
  %v278 = vunpack.c.l.b16 %v84
  %v279 = vunpack.c.l.b16 %v85
  %v280 = vunpack.c.l.b16 %v86
  %v281 = vunpack.c.l.b16 %v87
  %v282 = vunpack.c.l.b16 %v88
  %v283 = vunpack.c.l.b16 %v89
  %v284 = vunpack.c.l.b16 %v90
  %v285 = vunpack.c.l.b16 %v91
  %v286 = vunpack.c.l.b16 %v92
  %v287 = vunpack.c.l.b16 %v93
  %v288 = vunpack.c.l.b16 %v94
  %v289 = vunpack.c.l.b16 %v95
  %v290 = vunpack.c.l.b16 %v96
  %v291 = vunpack.c.l.b16 %v97
  %v292 = vunpack.c.l.b16 %v98
  %v293 = vunpack.c.l.b16 %v99
  %v294 = vunpack.c.l.b16 %v100
  %v295 = vunpack.c.l.b16 %v101
  %v296 = vunpack.c.l.b16 %v102
  %v297 = vunpack.c.l.b16 %v103
  %v298 = vunpack.c.l.b16 %v104
  %v299 = vunpack.c.l.b16 %v105
  %v300 = vunpack.c.l.b16 %v106
  %v301 = vunpack.c.l.b16 %v107
  %v302 = vunpack.c.l.b16 %v108
  %v303 = vunpack.c.l.b16 %v109
  %v304 = vunpack.c.l.b16 %v110
  %v305 = vpack.c.b16 %v234, %v233
  %v306 = vpack.c.b16 %v236, %v235
  %v307 = vpack.c.b16 %v238, %v237
  %v308 = vpack.c.b16 %v240, %v239
  %v309 = vpack.c.b16 %v242, %v241
  %v310 = vpack.c.b16 %v244, %v243
  %v311 = vpack.c.b16 %v246, %v245
  %v312 = vpack.c.b16 %v248, %v247
  %v313 = vpack.c.b16 %v250, %v249
  %v314 = vpack.c.b16 %v252, %v251
  %v315 = vpack.c.b16 %v254, %v253
  %v316 = vpack.c.b16 %v256, %v255
  %v317 = vpack.c.b16 %v258, %v257
  %v318 = vpack.c.b16 %v260, %v259
  %v319 = vpack.c.b16 %v262, %v261
  %v320 = vpack.c.b16 %v264, %v263
  %v321 = vpack.c.b16 %v266, %v265
  %v322 = vpack.c.b16 %v268, %v267
  %v323 = vpack.c.b16 %v270, %v269
  %v324 = vpack.c.b16 %v272, %v271
  %v325 = vpack.c.b16 %v274, %v273
  %v326 = vpack.c.b16 %v276, %v275
  %v327 = vpack.c.b16 %v278, %v277
  %v328 = vpack.c.b16 %v280, %v279
  %v329 = vpack.c.b16 %v282, %v281
  %v330 = vpack.c.b16 %v284, %v283
  %v331 = vpack.c.b16 %v286, %v285
  %v332 = vpack.c.b16 %v288, %v287
  %v333 = vpack.c.b16 %v290, %v289
  %v334 = vpack.c.b16 %v292, %v291
  %v335 = vpack.c.b16 %v294, %v293
  %v336 = vpack.c.b16 %v296, %v295
  %v337 = vpack.c.b16 %v298, %v297
  %v338 = vpack.c.b16 %v300, %v299
  %v339 = vpack.c.b16 %v302, %v301
  %v340 = vpack.c.b16 %v304, %v303
  %vm377 = vcmask 523264
  %v379 = vsel %vm377, %v147, 0
  %v382 = vsel %vm377, %v152, 0
  %384 = vmatprep.subr.bf16.mxu0 0
  %385 = vmatpush1.bf16.msra.mxu0 %v312
  %386 = vmatprep.subr.bf16.mxu0 0
  %387 = vmatpush1.bf16.msra.mxu0 %v311
  %388 = vmatprep.subr.bf16.mxu0 0
  %389 = vmatpush1.bf16.msra.mxu0 %v310
  %390 = vmatprep.subr.bf16.mxu0 0
  %391 = vmatpush1.bf16.msra.mxu0 %v309
  %392 = vmatprep.subr.bf16.mxu0 0
  %393 = vmatpush1.bf16.msra.mxu0 %v308
  %394 = vmatprep.subr.bf16.mxu0 0
  %395 = vmatpush1.bf16.msra.mxu0 %v307
  %396 = vmatprep.subr.bf16.mxu0 0
  %397 = vmatpush1.bf16.msra.mxu0 %v306
  %398 = vmatprep.subr.bf16.mxu0 0
  %399 = vmatpush1.bf16.msra.mxu0 %v305
  %400 = vmatprep.subr.bf16.mxu0 0
  %401 = vmatpush2.bf16.msra.mxu0 %v320
  %402 = vmatprep.subr.bf16.mxu0 0
  %403 = vmatpush2.bf16.msra.mxu0 %v319
  %404 = vmatprep.subr.bf16.mxu0 0
  %405 = vmatpush2.bf16.msra.mxu0 %v318
  %406 = vmatprep.subr.bf16.mxu0 0
  %407 = vmatpush2.bf16.msra.mxu0 %v317
  %408 = vmatprep.subr.bf16.mxu0 0
  %409 = vmatpush2.bf16.msra.mxu0 %v316
  %410 = vmatprep.subr.bf16.mxu0 0
  %411 = vmatpush2.bf16.msra.mxu0 %v315
  %412 = vmatprep.subr.bf16.mxu0 0
  %413 = vmatpush2.bf16.msra.mxu0 %v314
  %414 = vmatprep.subr.bf16.mxu0 0
  %415 = vmatpush2.bf16.msra.mxu0 %v313
  %416 = vmatprep.mubr.bf16.mxu0 %v144
  %417 = vmatmul.mubr.bf16.gmra.mxu0 %v143
  %v418 = vpop.f32.mrf.mxu0
  %v419 = vadd.f32 0.0, %v418
  %v420 = vpop.f32.mrf.mxu0
  %v421 = vpop.f32.mrf.mxu0
  %v422 = vadd.f32 0.0, %v421
  %v423 = vpop.f32.mrf.mxu0
  %424 = vmatprep.mubr.bf16.mxu0 %v149
  %425 = vmatmul.mubr.bf16.gmra.mxu0 %v148
  %v426 = vpop.f32.mrf.mxu0
  %v427 = vadd.f32 0.0, %v426
  %v428 = vpop.f32.mrf.mxu0
  %v429 = vpop.f32.mrf.mxu0
  %v430 = vadd.f32 0.0, %v429
  %v431 = vpop.f32.mrf.mxu0
  %432 = vdwg.mxu0
  %433 = vmatprep.subr.bf16.mxu0 0
  %434 = vmatpush1.bf16.msra.mxu0 %v328
  %435 = vmatprep.subr.bf16.mxu0 0
  %436 = vmatpush1.bf16.msra.mxu0 %v327
  %437 = vmatprep.subr.bf16.mxu0 0
  %438 = vmatpush1.bf16.msra.mxu0 %v326
  %439 = vmatprep.subr.bf16.mxu0 0
  %440 = vmatpush1.bf16.msra.mxu0 %v325
  %441 = vmatprep.subr.bf16.mxu0 0
  %442 = vmatpush1.bf16.msra.mxu0 %v324
  %443 = vmatprep.subr.bf16.mxu0 0
  %444 = vmatpush1.bf16.msra.mxu0 %v323
  %445 = vmatprep.subr.bf16.mxu0 0
  %446 = vmatpush1.bf16.msra.mxu0 %v322
  %447 = vmatprep.subr.bf16.mxu0 0
  %448 = vmatpush1.bf16.msra.mxu0 %v321
  %449 = vmatprep.subr.bf16.mxu0 0
  %450 = vmatpush2.bf16.msra.mxu0 %v336
  %451 = vmatprep.subr.bf16.mxu0 0
  %452 = vmatpush2.bf16.msra.mxu0 %v335
  %453 = vmatprep.subr.bf16.mxu0 0
  %454 = vmatpush2.bf16.msra.mxu0 %v334
  %455 = vmatprep.subr.bf16.mxu0 0
  %456 = vmatpush2.bf16.msra.mxu0 %v333
  %457 = vmatprep.subr.bf16.mxu0 0
  %458 = vmatpush2.bf16.msra.mxu0 %v332
  %459 = vmatprep.subr.bf16.mxu0 0
  %460 = vmatpush2.bf16.msra.mxu0 %v331
  %461 = vmatprep.subr.bf16.mxu0 0
  %462 = vmatpush2.bf16.msra.mxu0 %v330
  %463 = vmatprep.subr.bf16.mxu0 0
  %464 = vmatpush2.bf16.msra.mxu0 %v329
  %465 = vmatprep.mubr.bf16.mxu0 %v146
  %466 = vmatmul.mubr.bf16.gmra.mxu0 %v145
  %v467 = vpop.f32.mrf.mxu0
  %v468 = vadd.f32 %v419, %v467
  %v469 = vpop.f32.mrf.mxu0
  %v470 = vpop.f32.mrf.mxu0
  %v471 = vadd.f32 %v422, %v470
  %v472 = vpop.f32.mrf.mxu0
  %473 = vmatprep.mubr.bf16.mxu0 %v151
  %474 = vmatmul.mubr.bf16.gmra.mxu0 %v150
  %v475 = vpop.f32.mrf.mxu0
  %v476 = vadd.f32 %v427, %v475
  %v477 = vpop.f32.mrf.mxu0
  %v478 = vpop.f32.mrf.mxu0
  %v479 = vadd.f32 %v430, %v478
  %v480 = vpop.f32.mrf.mxu0
  %481 = vdwg.mxu0
  %482 = vmatprep.subr.bf16.mxu0 0
  %483 = vmatpush1.bf16.msra.mxu0 0
  %484 = vmatprep.subr.bf16.mxu0 0
  %485 = vmatpush1.bf16.msra.mxu0 0
  %486 = vmatprep.subr.bf16.mxu0 0
  %487 = vmatpush1.bf16.msra.mxu0 0
  %488 = vmatprep.subr.bf16.mxu0 0
  %489 = vmatpush1.bf16.msra.mxu0 0
  %490 = vmatprep.subr.bf16.mxu0 0
  %491 = vmatpush1.bf16.msra.mxu0 %v340
  %492 = vmatprep.subr.bf16.mxu0 0
  %493 = vmatpush1.bf16.msra.mxu0 %v339
  %494 = vmatprep.subr.bf16.mxu0 0
  %495 = vmatpush1.bf16.msra.mxu0 %v338
  %496 = vmatprep.subr.bf16.mxu0 0
  %497 = vmatpush1.bf16.msra.mxu0 %v337
  %498 = vmatprep.subr.bf16.mxu0 0
  %499 = vmatpush2.bf16.msra.mxu0 0
  %500 = vmatprep.subr.bf16.mxu0 0
  %501 = vmatpush2.bf16.msra.mxu0 0
  %502 = vmatprep.subr.bf16.mxu0 0
  %503 = vmatpush2.bf16.msra.mxu0 0
  %504 = vmatprep.subr.bf16.mxu0 0
  %505 = vmatpush2.bf16.msra.mxu0 0
  %506 = vmatprep.subr.bf16.mxu0 0
  %507 = vmatpush2.bf16.msra.mxu0 0
  %508 = vmatprep.subr.bf16.mxu0 0
  %509 = vmatpush2.bf16.msra.mxu0 0
  %510 = vmatprep.subr.bf16.mxu0 0
  %511 = vmatpush2.bf16.msra.mxu0 0
  %512 = vmatprep.subr.bf16.mxu0 0
  %513 = vmatpush2.bf16.msra.mxu0 0
  %514 = vmatprep.mubr.bf16.mxu0 0
  %515 = vmatmul.mubr.bf16.gmra.mxu0 %v379
  %v516 = vpop.f32.mrf.mxu0
  %v517 = vadd.f32 %v468, %v516
  %v518 = vpop.f32.mrf.mxu0
  %v519 = vpop.f32.mrf.mxu0
  %v520 = vadd.f32 %v471, %v519
  %v521 = vpop.f32.mrf.mxu0
  %522 = vmatprep.mubr.bf16.mxu0 0
  %523 = vmatmul.mubr.bf16.gmra.mxu0 %v382
  %v524 = vpop.f32.mrf.mxu0
  %v525 = vadd.f32 %v476, %v524
  %v526 = vpop.f32.mrf.mxu0
  %v527 = vpop.f32.mrf.mxu0
  %v528 = vadd.f32 %v479, %v527
  %v529 = vpop.f32.mrf.mxu0
  %530 = vdwg.mxu0
  %v531 = vadd.f32 %v23, %v517
  %v532 = vadd.f32 %v24, %v520
  %v533 = vadd.f32 %v25, %v525
  %v534 = vadd.f32 %v26, %v528
  %535 = vst [vmem:[#allocation2] sm:$0xff] %v531
  %536 = vst [vmem:[#allocation2 + $0x8] sm:$0xff] %v532
  %537 = vst [vmem:[#allocation2 + $0x10] sm:$0xff] %v533
  %538 = vst [vmem:[#allocation2 + $0x18] sm:$0xff] %v534
  // Predicated region
  $region18: #{conv_autoencoder_forward.5} parent=0 // pred_check
    %p539 = pneg %p15
  $region19: #{conv_autoencoder_forward.5} parent=0 // pred_check_branch
    %541 = sbr.rel (%p539) target = $region21
  $region20: #{conv_autoencoder_forward.5} parent=0 // pred_region
    %v542 = vld [vmem:[#allocation2] sm:$0xff]
    %v543 = vld [vmem:[#allocation2 + $0x8] sm:$0xff]
    %v544 = vld [vmem:[#allocation2 + $0x10] sm:$0xff]
    %v545 = vld [vmem:[#allocation2 + $0x18] sm:$0xff]
    %v546 = vld [vmem:[%s2] sm:$0x1]
    %v548 = vlaneseq
    %v549 = vshrl.u32 %v548, 7
    %v550 = vsub.s32 0, %v549
    %v551 = vrot.slane %v546, %v550
    %v553 = vadd.f32 %v542, %v551
    %v554 = vadd.f32 %v543, %v551
    %v555 = vadd.f32 %v544, %v551
    %v556 = vadd.f32 %v545, %v551
    %v557 = vmax.f32 %v553, 0.0
    %v558 = vmax.f32 %v554, 0.0
    %v559 = vmax.f32 %v555, 0.0
    %v560 = vmax.f32 %v556, 0.0
    %561 = vst [vmem:[%s3] sm:$0xff] %v557
    %562 = vst [vmem:[%s3 + $0x8] sm:$0xff] %v558
    %563 = vst [vmem:[%s3 + $0x10] sm:$0xff] %v559
    %564 = vst [vmem:[%s3 + $0x18] sm:$0xff] %v560
  $region21: #{conv_autoencoder_forward.5} parent=0 // pred_fallthru
    _
  // Predicated region
  $region22: #{conv_autoencoder_forward.5} parent=0 // pred_check
    _
  $region23: #{conv_autoencoder_forward.5} parent=0 // pred_check_branch
    %566 = sbr.rel (0) target = $region25
  $region24: #{conv_autoencoder_forward.5} parent=0 // pred_region
    _
  $region25: #{conv_autoencoder_forward.5} parent=0 // pred_fallthru
    _
  // Predicated region
  $region26: #{conv_autoencoder_forward.5} parent=0 // pred_check
    _
  $region27: #{conv_autoencoder_forward.5} parent=0 // pred_check_branch
    %568 = sbr.rel (0) target = $region29
  $region28: #{conv_autoencoder_forward.5} parent=0 // pred_region
    _
  $region29: #{conv_autoencoder_forward.5} parent=0 // pred_fallthru
    _

// kernel: tile.13
$region0: #{tile.13}
  #allocation0 [shape = 's32[1]{0}', space=sflag, size = 0x4, scoped, tag = 'scoped memory for tile.13']
  %s0 = inlined_call_operand.vmem [shape: f32[64], index: 0, kind: input, shape index: {}]
  %s1 = inlined_call_operand.vmem [shape: f32[4,64], index: 1, kind: output, shape index: {}]
  // Predicated region
  $region2: #{tile.13} parent=0 // pred_check
    _
  $region3: #{tile.13} parent=0 // pred_check_branch
    %3 = sbr.rel (0) target = $region5
  $region4: #{tile.13} parent=0 // pred_region
    _
  $region5: #{tile.13} parent=0 // pred_fallthru
    _
  %v4 = vld [vmem:[%s0] ss:$0 sm:$0xff]
  %5 = vst [vmem:[%s1] sm:$0xf] %v4

// kernel: conv_autoencoder_forward.6
$region0: #{conv_autoencoder_forward.6}
  #allocation0 [shape = 'u32[]', space=smem, size = 0x4, offset = 0x4, fixed_abs, tag = 'smem constant byte address 0x4 - core index']
  #allocation1 [shape = 'u32[144,128]{1,0:T(1,128)}', space=vmem, size = 0x12000, scoped, tag = 'internal scratch']
  #allocation2 [shape = 'f32[56,256]{1,0:T(8,128)}', space=vmem, size = 0xe000, scoped, tag = 'scratch operand']
  %s0 = inlined_call_operand.vmem [shape: bf16[56,512], index: 0, kind: input, shape index: {}]
  %s1 = inlined_call_operand.vmem [shape: bf16[512,256], index: 1, kind: input, shape index: {}]
  %s2 = inlined_call_operand.vmem [shape: f32[1,256], index: 2, kind: input, shape index: {}]
  %s3 = inlined_call_operand.vmem [shape: f32[56,256], index: 3, kind: output, shape index: {}]
  %s4 = sld [smem:[#allocation0]]
  $region30: #{conv_autoencoder_forward.6} parent=0
    _
  %s6 = ssub.s32 1, %s4
  %s7 = scalar_select 0, %s6, %s4
  // Predicated region
  $region2: #{conv_autoencoder_forward.6} parent=0 // pred_check
    _
  $region3: #{conv_autoencoder_forward.6} parent=0 // pred_check_branch
    %9 = sbr.rel (0) target = $region5
  $region4: #{conv_autoencoder_forward.6} parent=0 // pred_region
    _
  $region5: #{conv_autoencoder_forward.6} parent=0 // pred_fallthru
    _
  // Predicated region
  $region6: #{conv_autoencoder_forward.6} parent=0 // pred_check
    _
  $region7: #{conv_autoencoder_forward.6} parent=0 // pred_check_branch
    %11 = sbr.rel (0) target = $region9
  $region8: #{conv_autoencoder_forward.6} parent=0 // pred_region
    _
  $region9: #{conv_autoencoder_forward.6} parent=0 // pred_fallthru
    _
  // Predicated region
  $region10: #{conv_autoencoder_forward.6} parent=0 // pred_check
    _
  $region11: #{conv_autoencoder_forward.6} parent=0 // pred_check_branch
    %13 = sbr.rel (0) target = $region13
  $region12: #{conv_autoencoder_forward.6} parent=0 // pred_region
    _
  $region13: #{conv_autoencoder_forward.6} parent=0 // pred_fallthru
    _
  %p14 = scmp.eq.s32.totalorder 0, 0
  // Predicated region
  $region14: #{conv_autoencoder_forward.6} parent=0 // pred_check
    %p15 = pneg %p14
  $region15: #{conv_autoencoder_forward.6} parent=0 // pred_check_branch
    %17 = sbr.rel (%p15) target = $region17
  $region16: #{conv_autoencoder_forward.6} parent=0 // pred_region
    %18 = vst [vmem:[#allocation2] sm:$0xff] 0.0
    %19 = vst [vmem:[#allocation2 + $0x8] sm:$0xff] 0.0
    %20 = vst [vmem:[#allocation2 + $0x10] sm:$0xff] 0.0
    %21 = vst [vmem:[#allocation2 + $0x18] sm:$0xff] 0.0
    %22 = vst [vmem:[#allocation2 + $0x20] sm:$0xff] 0.0
    %23 = vst [vmem:[#allocation2 + $0x28] sm:$0xff] 0.0
    %24 = vst [vmem:[#allocation2 + $0x30] sm:$0xff] 0.0
    %25 = vst [vmem:[#allocation2 + $0x38] sm:$0xff] 0.0
    %26 = vst [vmem:[#allocation2 + $0x40] sm:$0xff] 0.0
    %27 = vst [vmem:[#allocation2 + $0x48] sm:$0xff] 0.0
    %28 = vst [vmem:[#allocation2 + $0x50] sm:$0xff] 0.0
    %29 = vst [vmem:[#allocation2 + $0x58] sm:$0xff] 0.0
    %30 = vst [vmem:[#allocation2 + $0x60] sm:$0xff] 0.0
    %31 = vst [vmem:[#allocation2 + $0x68] sm:$0xff] 0.0
  $region17: #{conv_autoencoder_forward.6} parent=0 // pred_fallthru
    _
  %v32 = vld [vmem:[#allocation2] sm:$0xff]
  %v33 = vld [vmem:[#allocation2 + $0x8] sm:$0xff]
  %v34 = vld [vmem:[#allocation2 + $0x10] sm:$0xff]
  %v35 = vld [vmem:[#allocation2 + $0x18] sm:$0xff]
  %v36 = vld [vmem:[#allocation2 + $0x20] sm:$0xff]
  %v37 = vld [vmem:[#allocation2 + $0x28] sm:$0xff]
  %v38 = vld [vmem:[#allocation2 + $0x30] sm:$0xff]
  %v39 = vld [vmem:[#allocation2 + $0x38] sm:$0xff]
  %v40 = vld [vmem:[#allocation2 + $0x40] sm:$0xff]
  %v41 = vld [vmem:[#allocation2 + $0x48] sm:$0xff]
  %v42 = vld [vmem:[#allocation2 + $0x50] sm:$0xff]
  %v43 = vld [vmem:[#allocation2 + $0x58] sm:$0xff]
  %v44 = vld [vmem:[#allocation2 + $0x60] sm:$0xff]
  %v45 = vld [vmem:[#allocation2 + $0x68] sm:$0xff]
  %v46 = vld [vmem:[%s0] sm:$0xff]
  %v47 = vld [vmem:[%s0 + $0x8] sm:$0xff]
  %v48 = vld [vmem:[%s0 + $0x10] sm:$0xff]
  %v49 = vld [vmem:[%s0 + $0x18] sm:$0xff]
  %v50 = vld [vmem:[%s0 + $0x20] sm:$0xff]
  %v51 = vld [vmem:[%s0 + $0x28] sm:$0xff]
  %v52 = vld [vmem:[%s0 + $0x30] sm:$0xff]
  %v53 = vld [vmem:[%s0 + $0x38] sm:$0xff]
  %v54 = vld [vmem:[%s0 + $0x40] sm:$0xff]
  %v55 = vld [vmem:[%s0 + $0x48] sm:$0xff]
  %v56 = vld [vmem:[%s0 + $0x50] sm:$0xff]
  %v57 = vld [vmem:[%s0 + $0x58] sm:$0xff]
  %v58 = vld [vmem:[%s0 + $0x60] sm:$0xff]
  %v59 = vld [vmem:[%s0 + $0x68] sm:$0xff]
  %v60 = vld [vmem:[%s1] sm:$0xff]
  %v61 = vld [vmem:[%s1 + $0x8] sm:$0xff]
  %v62 = vld [vmem:[%s1 + $0x10] sm:$0xff]
  %v63 = vld [vmem:[%s1 + $0x18] sm:$0xff]
  %v64 = vld [vmem:[%s1 + $0x20] sm:$0xff]
  %v65 = vld [vmem:[%s1 + $0x28] sm:$0xff]
  %v66 = vld [vmem:[%s1 + $0x30] sm:$0xff]
  %v67 = vld [vmem:[%s1 + $0x38] sm:$0xff]
  %v68 = vld [vmem:[%s1 + $0x40] sm:$0xff]
  %v69 = vld [vmem:[%s1 + $0x48] sm:$0xff]
  %v70 = vld [vmem:[%s1 + $0x50] sm:$0xff]
  %v71 = vld [vmem:[%s1 + $0x58] sm:$0xff]
  %v72 = vld [vmem:[%s1 + $0x60] sm:$0xff]
  %v73 = vld [vmem:[%s1 + $0x68] sm:$0xff]
  %v74 = vld [vmem:[%s1 + $0x70] sm:$0xff]
  %v75 = vld [vmem:[%s1 + $0x78] sm:$0xff]
  %v76 = vld [vmem:[%s1 + $0x80] sm:$0xff]
  %v77 = vld [vmem:[%s1 + $0x88] sm:$0xff]
  %v78 = vld [vmem:[%s1 + $0x90] sm:$0xff]
  %v79 = vld [vmem:[%s1 + $0x98] sm:$0xff]
  %v80 = vld [vmem:[%s1 + $0xa0] sm:$0xff]
  %v81 = vld [vmem:[%s1 + $0xa8] sm:$0xff]
  %v82 = vld [vmem:[%s1 + $0xb0] sm:$0xff]
  %v83 = vld [vmem:[%s1 + $0xb8] sm:$0xff]
  %v84 = vld [vmem:[%s1 + $0xc0] sm:$0xff]
  %v85 = vld [vmem:[%s1 + $0xc8] sm:$0xff]
  %v86 = vld [vmem:[%s1 + $0xd0] sm:$0xff]
  %v87 = vld [vmem:[%s1 + $0xd8] sm:$0xff]
  %v88 = vld [vmem:[%s1 + $0xe0] sm:$0xff]
  %v89 = vld [vmem:[%s1 + $0xe8] sm:$0xff]
  %v90 = vld [vmem:[%s1 + $0xf0] sm:$0xff]
  %v91 = vld [vmem:[%s1 + $0xf8] sm:$0xff]
  %v92 = vld [vmem:[%s1 + $0x100] sm:$0xff]
  %v93 = vld [vmem:[%s1 + $0x108] sm:$0xff]
  %v94 = vld [vmem:[%s1 + $0x110] sm:$0xff]
  %v95 = vld [vmem:[%s1 + $0x118] sm:$0xff]
  %v96 = vld [vmem:[%s1 + $0x120] sm:$0xff]
  %v97 = vld [vmem:[%s1 + $0x128] sm:$0xff]
  %v98 = vld [vmem:[%s1 + $0x130] sm:$0xff]
  %v99 = vld [vmem:[%s1 + $0x138] sm:$0xff]
  %v100 = vld [vmem:[%s1 + $0x140] sm:$0xff]
  %v101 = vld [vmem:[%s1 + $0x148] sm:$0xff]
  %v102 = vld [vmem:[%s1 + $0x150] sm:$0xff]
  %v103 = vld [vmem:[%s1 + $0x158] sm:$0xff]
  %v104 = vld [vmem:[%s1 + $0x160] sm:$0xff]
  %v105 = vld [vmem:[%s1 + $0x168] sm:$0xff]
  %v106 = vld [vmem:[%s1 + $0x170] sm:$0xff]
  %v107 = vld [vmem:[%s1 + $0x178] sm:$0xff]
  %v108 = vld [vmem:[%s1 + $0x180] sm:$0xff]
  %v109 = vld [vmem:[%s1 + $0x188] sm:$0xff]
  %v110 = vld [vmem:[%s1 + $0x190] sm:$0xff]
  %v111 = vld [vmem:[%s1 + $0x198] sm:$0xff]
  %v112 = vld [vmem:[%s1 + $0x1a0] sm:$0xff]
  %v113 = vld [vmem:[%s1 + $0x1a8] sm:$0xff]
  %v114 = vld [vmem:[%s1 + $0x1b0] sm:$0xff]
  %v115 = vld [vmem:[%s1 + $0x1b8] sm:$0xff]
  %v116 = vld [vmem:[%s1 + $0x1c0] sm:$0xff]
  %v117 = vld [vmem:[%s1 + $0x1c8] sm:$0xff]
  %v118 = vld [vmem:[%s1 + $0x1d0] sm:$0xff]
  %v119 = vld [vmem:[%s1 + $0x1d8] sm:$0xff]
  %v120 = vld [vmem:[%s1 + $0x1e0] sm:$0xff]
  %v121 = vld [vmem:[%s1 + $0x1e8] sm:$0xff]
  %v122 = vld [vmem:[%s1 + $0x1f0] sm:$0xff]
  %v123 = vld [vmem:[%s1 + $0x1f8] sm:$0xff]
  %v138 = vunpack.c.l.b16 %v46
  %v139 = vunpack.c.h.b16 %v46
  %v140 = vunpack.c.l.b16 %v47
  %v141 = vunpack.c.h.b16 %v47
  %v142 = vunpack.c.l.b16 %v48
  %v143 = vunpack.c.h.b16 %v48
  %v144 = vunpack.c.l.b16 %v49
  %v145 = vunpack.c.h.b16 %v49
  %v146 = vunpack.c.l.b16 %v50
  %v147 = vunpack.c.h.b16 %v50
  %v148 = vunpack.c.l.b16 %v51
  %v149 = vunpack.c.h.b16 %v51
  %v150 = vunpack.c.l.b16 %v52
  %v151 = vunpack.c.h.b16 %v52
  %v152 = vunpack.c.l.b16 %v53
  %v153 = vunpack.c.h.b16 %v53
  %v154 = vunpack.c.l.b16 %v54
  %v155 = vunpack.c.h.b16 %v54
  %v156 = vunpack.c.l.b16 %v55
  %v157 = vunpack.c.h.b16 %v55
  %v158 = vunpack.c.l.b16 %v56
  %v159 = vunpack.c.h.b16 %v56
  %v160 = vunpack.c.l.b16 %v57
  %v161 = vunpack.c.h.b16 %v57
  %v162 = vunpack.c.l.b16 %v58
  %v163 = vunpack.c.h.b16 %v58
  %v164 = vunpack.c.l.b16 %v59
  %v165 = vunpack.c.h.b16 %v59
  %v166 = vpack.c.b16 %v142, %v138
  %v167 = vpack.c.b16 %v143, %v139
  %v168 = vpack.c.b16 %v144, %v140
  %v169 = vpack.c.b16 %v145, %v141
  %v170 = vpack.c.b16 %v150, %v146
  %v171 = vpack.c.b16 %v151, %v147
  %v172 = vpack.c.b16 %v152, %v148
  %v173 = vpack.c.b16 %v153, %v149
  %v174 = vpack.c.b16 %v158, %v154
  %v175 = vpack.c.b16 %v159, %v155
  %v176 = vpack.c.b16 %v160, %v156
  %v177 = vpack.c.b16 %v161, %v157
  %v178 = vpack.c.b16 %v162, %v162
  %v179 = vpack.c.b16 %v163, %v163
  %v180 = vpack.c.b16 %v164, %v164
  %v181 = vpack.c.b16 %v165, %v165
  %v262 = vunpack.c.l.b16 %v60
  %v263 = vunpack.c.h.b16 %v60
  %v264 = vunpack.c.l.b16 %v61
  %v265 = vunpack.c.h.b16 %v61
  %v266 = vunpack.c.l.b16 %v62
  %v267 = vunpack.c.h.b16 %v62
  %v268 = vunpack.c.l.b16 %v63
  %v269 = vunpack.c.h.b16 %v63
  %v270 = vunpack.c.l.b16 %v64
  %v271 = vunpack.c.h.b16 %v64
  %v272 = vunpack.c.l.b16 %v65
  %v273 = vunpack.c.h.b16 %v65
  %v274 = vunpack.c.l.b16 %v66
  %v275 = vunpack.c.h.b16 %v66
  %v276 = vunpack.c.l.b16 %v67
  %v277 = vunpack.c.h.b16 %v67
  %v278 = vunpack.c.l.b16 %v68
  %v279 = vunpack.c.h.b16 %v68
  %v280 = vunpack.c.l.b16 %v69
  %v281 = vunpack.c.h.b16 %v69
  %v282 = vunpack.c.l.b16 %v70
  %v283 = vunpack.c.h.b16 %v70
  %v284 = vunpack.c.l.b16 %v71
  %v285 = vunpack.c.h.b16 %v71
  %v286 = vunpack.c.l.b16 %v72
  %v287 = vunpack.c.h.b16 %v72
  %v288 = vunpack.c.l.b16 %v73
  %v289 = vunpack.c.h.b16 %v73
  %v290 = vunpack.c.l.b16 %v74
  %v291 = vunpack.c.h.b16 %v74
  %v292 = vunpack.c.l.b16 %v75
  %v293 = vunpack.c.h.b16 %v75
  %v294 = vunpack.c.l.b16 %v76
  %v295 = vunpack.c.h.b16 %v76
  %v296 = vunpack.c.l.b16 %v77
  %v297 = vunpack.c.h.b16 %v77
  %v298 = vunpack.c.l.b16 %v78
  %v299 = vunpack.c.h.b16 %v78
  %v300 = vunpack.c.l.b16 %v79
  %v301 = vunpack.c.h.b16 %v79
  %v302 = vunpack.c.l.b16 %v80
  %v303 = vunpack.c.h.b16 %v80
  %v304 = vunpack.c.l.b16 %v81
  %v305 = vunpack.c.h.b16 %v81
  %v306 = vunpack.c.l.b16 %v82
  %v307 = vunpack.c.h.b16 %v82
  %v308 = vunpack.c.l.b16 %v83
  %v309 = vunpack.c.h.b16 %v83
  %v310 = vunpack.c.l.b16 %v84
  %v311 = vunpack.c.h.b16 %v84
  %v312 = vunpack.c.l.b16 %v85
  %v313 = vunpack.c.h.b16 %v85
  %v314 = vunpack.c.l.b16 %v86
  %v315 = vunpack.c.h.b16 %v86
  %v316 = vunpack.c.l.b16 %v87
  %v317 = vunpack.c.h.b16 %v87
  %v318 = vunpack.c.l.b16 %v88
  %v319 = vunpack.c.h.b16 %v88
  %v320 = vunpack.c.l.b16 %v89
  %v321 = vunpack.c.h.b16 %v89
  %v322 = vunpack.c.l.b16 %v90
  %v323 = vunpack.c.h.b16 %v90
  %v324 = vunpack.c.l.b16 %v91
  %v325 = vunpack.c.h.b16 %v91
  %v326 = vunpack.c.l.b16 %v92
  %v327 = vunpack.c.h.b16 %v92
  %v328 = vunpack.c.l.b16 %v93
  %v329 = vunpack.c.h.b16 %v93
  %v330 = vunpack.c.l.b16 %v94
  %v331 = vunpack.c.h.b16 %v94
  %v332 = vunpack.c.l.b16 %v95
  %v333 = vunpack.c.h.b16 %v95
  %v334 = vunpack.c.l.b16 %v96
  %v335 = vunpack.c.h.b16 %v96
  %v336 = vunpack.c.l.b16 %v97
  %v337 = vunpack.c.h.b16 %v97
  %v338 = vunpack.c.l.b16 %v98
  %v339 = vunpack.c.h.b16 %v98
  %v340 = vunpack.c.l.b16 %v99
  %v341 = vunpack.c.h.b16 %v99
  %v342 = vunpack.c.l.b16 %v100
  %v343 = vunpack.c.h.b16 %v100
  %v344 = vunpack.c.l.b16 %v101
  %v345 = vunpack.c.h.b16 %v101
  %v346 = vunpack.c.l.b16 %v102
  %v347 = vunpack.c.h.b16 %v102
  %v348 = vunpack.c.l.b16 %v103
  %v349 = vunpack.c.h.b16 %v103
  %v350 = vunpack.c.l.b16 %v104
  %v351 = vunpack.c.h.b16 %v104
  %v352 = vunpack.c.l.b16 %v105
  %v353 = vunpack.c.h.b16 %v105
  %v354 = vunpack.c.l.b16 %v106
  %v355 = vunpack.c.h.b16 %v106
  %v356 = vunpack.c.l.b16 %v107
  %v357 = vunpack.c.h.b16 %v107
  %v358 = vunpack.c.l.b16 %v108
  %v359 = vunpack.c.h.b16 %v108
  %v360 = vunpack.c.l.b16 %v109
  %v361 = vunpack.c.h.b16 %v109
  %v362 = vunpack.c.l.b16 %v110
  %v363 = vunpack.c.h.b16 %v110
  %v364 = vunpack.c.l.b16 %v111
  %v365 = vunpack.c.h.b16 %v111
  %v366 = vunpack.c.l.b16 %v112
  %v367 = vunpack.c.h.b16 %v112
  %v368 = vunpack.c.l.b16 %v113
  %v369 = vunpack.c.h.b16 %v113
  %v370 = vunpack.c.l.b16 %v114
  %v371 = vunpack.c.h.b16 %v114
  %v372 = vunpack.c.l.b16 %v115
  %v373 = vunpack.c.h.b16 %v115
  %v374 = vunpack.c.l.b16 %v116
  %v375 = vunpack.c.h.b16 %v116
  %v376 = vunpack.c.l.b16 %v117
  %v377 = vunpack.c.h.b16 %v117
  %v378 = vunpack.c.l.b16 %v118
  %v379 = vunpack.c.h.b16 %v118
  %v380 = vunpack.c.l.b16 %v119
  %v381 = vunpack.c.h.b16 %v119
  %v382 = vunpack.c.l.b16 %v120
  %v383 = vunpack.c.h.b16 %v120
  %v384 = vunpack.c.l.b16 %v121
  %v385 = vunpack.c.h.b16 %v121
  %v386 = vunpack.c.l.b16 %v122
  %v387 = vunpack.c.h.b16 %v122
  %v388 = vunpack.c.l.b16 %v123
  %v389 = vunpack.c.h.b16 %v123
  %v390 = vpack.c.b16 %v264, %v262
  %v391 = vpack.c.b16 %v265, %v263
  %v392 = vpack.c.b16 %v268, %v266
  %v393 = vpack.c.b16 %v269, %v267
  %v394 = vpack.c.b16 %v272, %v270
  %v395 = vpack.c.b16 %v273, %v271
  %v396 = vpack.c.b16 %v276, %v274
  %v397 = vpack.c.b16 %v277, %v275
  %v398 = vpack.c.b16 %v280, %v278
  %v399 = vpack.c.b16 %v281, %v279
  %v400 = vpack.c.b16 %v284, %v282
  %v401 = vpack.c.b16 %v285, %v283
  %v402 = vpack.c.b16 %v288, %v286
  %v403 = vpack.c.b16 %v289, %v287
  %v404 = vpack.c.b16 %v292, %v290
  %v405 = vpack.c.b16 %v293, %v291
  %v406 = vpack.c.b16 %v296, %v294
  %v407 = vpack.c.b16 %v297, %v295
  %v408 = vpack.c.b16 %v300, %v298
  %v409 = vpack.c.b16 %v301, %v299
  %v410 = vpack.c.b16 %v304, %v302
  %v411 = vpack.c.b16 %v305, %v303
  %v412 = vpack.c.b16 %v308, %v306
  %v413 = vpack.c.b16 %v309, %v307
  %v414 = vpack.c.b16 %v312, %v310
  %v415 = vpack.c.b16 %v313, %v311
  %v416 = vpack.c.b16 %v316, %v314
  %v417 = vpack.c.b16 %v317, %v315
  %v418 = vpack.c.b16 %v320, %v318
  %v419 = vpack.c.b16 %v321, %v319
  %v420 = vpack.c.b16 %v324, %v322
  %v421 = vpack.c.b16 %v325, %v323
  %v422 = vpack.c.b16 %v328, %v326
  %v423 = vpack.c.b16 %v329, %v327
  %v424 = vpack.c.b16 %v332, %v330
  %v425 = vpack.c.b16 %v333, %v331
  %v426 = vpack.c.b16 %v336, %v334
  %v427 = vpack.c.b16 %v337, %v335
  %v428 = vpack.c.b16 %v340, %v338
  %v429 = vpack.c.b16 %v341, %v339
  %v430 = vpack.c.b16 %v344, %v342
  %v431 = vpack.c.b16 %v345, %v343
  %v432 = vpack.c.b16 %v348, %v346
  %v433 = vpack.c.b16 %v349, %v347
  %v434 = vpack.c.b16 %v352, %v350
  %v435 = vpack.c.b16 %v353, %v351
  %v436 = vpack.c.b16 %v356, %v354
  %v437 = vpack.c.b16 %v357, %v355
  %v438 = vpack.c.b16 %v360, %v358
  %v439 = vpack.c.b16 %v361, %v359
  %v440 = vpack.c.b16 %v364, %v362
  %v441 = vpack.c.b16 %v365, %v363
  %v442 = vpack.c.b16 %v368, %v366
  %v443 = vpack.c.b16 %v369, %v367
  %v444 = vpack.c.b16 %v372, %v370
  %v445 = vpack.c.b16 %v373, %v371
  %v446 = vpack.c.b16 %v376, %v374
  %v447 = vpack.c.b16 %v377, %v375
  %v448 = vpack.c.b16 %v380, %v378
  %v449 = vpack.c.b16 %v381, %v379
  %v450 = vpack.c.b16 %v384, %v382
  %v451 = vpack.c.b16 %v385, %v383
  %v452 = vpack.c.b16 %v388, %v386
  %v453 = vpack.c.b16 %v389, %v387
  %518 = vmatprep.subr.bf16.mxu0 %v405
  %519 = vmatpush1.bf16.msra.mxu0 %v404
  %520 = vmatprep.subr.bf16.mxu0 %v403
  %521 = vmatpush1.bf16.msra.mxu0 %v402
  %522 = vmatprep.subr.bf16.mxu0 %v401
  %523 = vmatpush1.bf16.msra.mxu0 %v400
  %524 = vmatprep.subr.bf16.mxu0 %v399
  %525 = vmatpush1.bf16.msra.mxu0 %v398
  %526 = vmatprep.subr.bf16.mxu0 %v397
  %527 = vmatpush1.bf16.msra.mxu0 %v396
  %528 = vmatprep.subr.bf16.mxu0 %v395
  %529 = vmatpush1.bf16.msra.mxu0 %v394
  %530 = vmatprep.subr.bf16.mxu0 %v393
  %531 = vmatpush1.bf16.msra.mxu0 %v392
  %532 = vmatprep.subr.bf16.mxu0 %v391
  %533 = vmatpush1.bf16.msra.mxu0 %v390
  %534 = vmatprep.subr.bf16.mxu0 %v421
  %535 = vmatpush2.bf16.msra.mxu0 %v420
  %536 = vmatprep.subr.bf16.mxu0 %v419
  %537 = vmatpush2.bf16.msra.mxu0 %v418
  %538 = vmatprep.subr.bf16.mxu0 %v417
  %539 = vmatpush2.bf16.msra.mxu0 %v416
  %540 = vmatprep.subr.bf16.mxu0 %v415
  %541 = vmatpush2.bf16.msra.mxu0 %v414
  %542 = vmatprep.subr.bf16.mxu0 %v413
  %543 = vmatpush2.bf16.msra.mxu0 %v412
  %544 = vmatprep.subr.bf16.mxu0 %v411
  %545 = vmatpush2.bf16.msra.mxu0 %v410
  %546 = vmatprep.subr.bf16.mxu0 %v409
  %547 = vmatpush2.bf16.msra.mxu0 %v408
  %548 = vmatprep.subr.bf16.mxu0 %v407
  %549 = vmatpush2.bf16.msra.mxu0 %v406
  %550 = vmatprep.mubr.bf16.mxu0 %v167
  %551 = vmatmul.mubr.bf16.gmra.mxu0 %v166
  %v552 = vpop.f32.mrf.mxu0
  %v553 = vadd.f32 0.0, %v552
  %v554 = vpop.f32.mrf.mxu0
  %v555 = vadd.f32 0.0, %v554
  %v556 = vpop.f32.mrf.mxu0
  %v557 = vadd.f32 0.0, %v556
  %v558 = vpop.f32.mrf.mxu0
  %v559 = vadd.f32 0.0, %v558
  %560 = vmatprep.mubr.bf16.mxu0 %v171
  %561 = vmatmul.mubr.bf16.gmra.mxu0 %v170
  %v562 = vpop.f32.mrf.mxu0
  %v563 = vadd.f32 0.0, %v562
  %v564 = vpop.f32.mrf.mxu0
  %v565 = vadd.f32 0.0, %v564
  %v566 = vpop.f32.mrf.mxu0
  %v567 = vadd.f32 0.0, %v566
  %v568 = vpop.f32.mrf.mxu0
  %v569 = vadd.f32 0.0, %v568
  %570 = vmatprep.mubr.bf16.mxu0 %v175
  %571 = vmatmul.mubr.bf16.gmra.mxu0 %v174
  %v572 = vpop.f32.mrf.mxu0
  %v573 = vadd.f32 0.0, %v572
  %v574 = vpop.f32.mrf.mxu0
  %v575 = vadd.f32 0.0, %v574
  %v576 = vpop.f32.mrf.mxu0
  %v577 = vadd.f32 0.0, %v576
  %v578 = vpop.f32.mrf.mxu0
  %v579 = vadd.f32 0.0, %v578
  %580 = vmatprep.mubr.bf16.mxu0 %v179
  %581 = vmatmul.mubr.bf16.gmra.mxu0 %v178
  %v582 = vpop.f32.mrf.mxu0
  %v583 = vadd.f32 0.0, %v582
  %v584 = vpop.f32.mrf.mxu0
  %v585 = vadd.f32 0.0, %v584
  %v586 = vpop.f32.mrf.mxu0
  %v587 = vpop.f32.mrf.mxu0
  %588 = vdwg.mxu0
  %589 = vmatprep.subr.bf16.mxu0 %v437
  %590 = vmatpush1.bf16.msra.mxu0 %v436
  %591 = vmatprep.subr.bf16.mxu0 %v435
  %592 = vmatpush1.bf16.msra.mxu0 %v434
  %593 = vmatprep.subr.bf16.mxu0 %v433
  %594 = vmatpush1.bf16.msra.mxu0 %v432
  %595 = vmatprep.subr.bf16.mxu0 %v431
  %596 = vmatpush1.bf16.msra.mxu0 %v430
  %597 = vmatprep.subr.bf16.mxu0 %v429
  %598 = vmatpush1.bf16.msra.mxu0 %v428
  %599 = vmatprep.subr.bf16.mxu0 %v427
  %600 = vmatpush1.bf16.msra.mxu0 %v426
  %601 = vmatprep.subr.bf16.mxu0 %v425
  %602 = vmatpush1.bf16.msra.mxu0 %v424
  %603 = vmatprep.subr.bf16.mxu0 %v423
  %604 = vmatpush1.bf16.msra.mxu0 %v422
  %605 = vmatprep.subr.bf16.mxu0 %v453
  %606 = vmatpush2.bf16.msra.mxu0 %v452
  %607 = vmatprep.subr.bf16.mxu0 %v451
  %608 = vmatpush2.bf16.msra.mxu0 %v450
  %609 = vmatprep.subr.bf16.mxu0 %v449
  %610 = vmatpush2.bf16.msra.mxu0 %v448
  %611 = vmatprep.subr.bf16.mxu0 %v447
  %612 = vmatpush2.bf16.msra.mxu0 %v446
  %613 = vmatprep.subr.bf16.mxu0 %v445
  %614 = vmatpush2.bf16.msra.mxu0 %v444
  %615 = vmatprep.subr.bf16.mxu0 %v443
  %616 = vmatpush2.bf16.msra.mxu0 %v442
  %617 = vmatprep.subr.bf16.mxu0 %v441
  %618 = vmatpush2.bf16.msra.mxu0 %v440
  %619 = vmatprep.subr.bf16.mxu0 %v439
  %620 = vmatpush2.bf16.msra.mxu0 %v438
  %621 = vmatprep.mubr.bf16.mxu0 %v169
  %622 = vmatmul.mubr.bf16.gmra.mxu0 %v168
  %v623 = vpop.f32.mrf.mxu0
  %v624 = vadd.f32 %v553, %v623
  %v625 = vpop.f32.mrf.mxu0
  %v626 = vadd.f32 %v555, %v625
  %v627 = vpop.f32.mrf.mxu0
  %v628 = vadd.f32 %v557, %v627
  %v629 = vpop.f32.mrf.mxu0
  %v630 = vadd.f32 %v559, %v629
  %631 = vmatprep.mubr.bf16.mxu0 %v173
  %632 = vmatmul.mubr.bf16.gmra.mxu0 %v172
  %v633 = vpop.f32.mrf.mxu0
  %v634 = vadd.f32 %v563, %v633
  %v635 = vpop.f32.mrf.mxu0
  %v636 = vadd.f32 %v565, %v635
  %v637 = vpop.f32.mrf.mxu0
  %v638 = vadd.f32 %v567, %v637
  %v639 = vpop.f32.mrf.mxu0
  %v640 = vadd.f32 %v569, %v639
  %641 = vmatprep.mubr.bf16.mxu0 %v177
  %642 = vmatmul.mubr.bf16.gmra.mxu0 %v176
  %v643 = vpop.f32.mrf.mxu0
  %v644 = vadd.f32 %v573, %v643
  %v645 = vpop.f32.mrf.mxu0
  %v646 = vadd.f32 %v575, %v645
  %v647 = vpop.f32.mrf.mxu0
  %v648 = vadd.f32 %v577, %v647
  %v649 = vpop.f32.mrf.mxu0
  %v650 = vadd.f32 %v579, %v649
  %651 = vmatprep.mubr.bf16.mxu0 %v181
  %652 = vmatmul.mubr.bf16.gmra.mxu0 %v180
  %v653 = vpop.f32.mrf.mxu0
  %v654 = vadd.f32 %v583, %v653
  %v655 = vpop.f32.mrf.mxu0
  %v656 = vadd.f32 %v585, %v655
  %v657 = vpop.f32.mrf.mxu0
  %v658 = vpop.f32.mrf.mxu0
  %659 = vdwg.mxu0
  %v660 = vadd.f32 %v32, %v624
  %v661 = vadd.f32 %v33, %v626
  %v662 = vadd.f32 %v34, %v628
  %v663 = vadd.f32 %v35, %v630
  %v664 = vadd.f32 %v36, %v634
  %v665 = vadd.f32 %v37, %v636
  %v666 = vadd.f32 %v38, %v638
  %v667 = vadd.f32 %v39, %v640
  %v668 = vadd.f32 %v40, %v644
  %v669 = vadd.f32 %v41, %v646
  %v670 = vadd.f32 %v42, %v648
  %v671 = vadd.f32 %v43, %v650
  %v672 = vadd.f32 %v44, %v654
  %v673 = vadd.f32 %v45, %v656
  %674 = vst [vmem:[#allocation2] sm:$0xff] %v660
  %675 = vst [vmem:[#allocation2 + $0x8] sm:$0xff] %v661
  %676 = vst [vmem:[#allocation2 + $0x10] sm:$0xff] %v662
  %677 = vst [vmem:[#allocation2 + $0x18] sm:$0xff] %v663
  %678 = vst [vmem:[#allocation2 + $0x20] sm:$0xff] %v664
  %679 = vst [vmem:[#allocation2 + $0x28] sm:$0xff] %v665
  %680 = vst [vmem:[#allocation2 + $0x30] sm:$0xff] %v666
  %681 = vst [vmem:[#allocation2 + $0x38] sm:$0xff] %v667
  %682 = vst [vmem:[#allocation2 + $0x40] sm:$0xff] %v668
  %683 = vst [vmem:[#allocation2 + $0x48] sm:$0xff] %v669
  %684 = vst [vmem:[#allocation2 + $0x50] sm:$0xff] %v670
  %685 = vst [vmem:[#allocation2 + $0x58] sm:$0xff] %v671
  %686 = vst [vmem:[#allocation2 + $0x60] sm:$0xff] %v672
  %687 = vst [vmem:[#allocation2 + $0x68] sm:$0xff] %v673
  // Predicated region
  $region18: #{conv_autoencoder_forward.6} parent=0 // pred_check
    %p688 = pneg %p14
  $region19: #{conv_autoencoder_forward.6} parent=0 // pred_check_branch
    %690 = sbr.rel (%p688) target = $region21
  $region20: #{conv_autoencoder_forward.6} parent=0 // pred_region
    %v691 = vld [vmem:[#allocation2] sm:$0xff]
    %v692 = vld [vmem:[#allocation2 + $0x8] sm:$0xff]
    %v693 = vld [vmem:[#allocation2 + $0x10] sm:$0xff]
    %v694 = vld [vmem:[#allocation2 + $0x18] sm:$0xff]
    %v695 = vld [vmem:[#allocation2 + $0x20] sm:$0xff]
    %v696 = vld [vmem:[#allocation2 + $0x28] sm:$0xff]
    %v697 = vld [vmem:[#allocation2 + $0x30] sm:$0xff]
    %v698 = vld [vmem:[#allocation2 + $0x38] sm:$0xff]
    %v699 = vld [vmem:[#allocation2 + $0x40] sm:$0xff]
    %v700 = vld [vmem:[#allocation2 + $0x48] sm:$0xff]
    %v701 = vld [vmem:[#allocation2 + $0x50] sm:$0xff]
    %v702 = vld [vmem:[#allocation2 + $0x58] sm:$0xff]
    %v703 = vld [vmem:[#allocation2 + $0x60] sm:$0xff]
    %v704 = vld [vmem:[#allocation2 + $0x68] sm:$0xff]
    %v705 = vld [vmem:[%s2] sm:$0x3]
    %v707 = vlaneseq
    %v708 = vshrl.u32 %v707, 7
    %v709 = vsub.s32 0, %v708
    %v710 = vrot.slane %v705, %v709
    %v711 = vlaneseq
    %v712 = vshrl.u32 %v711, 7
    %v713 = vsub.s32 1, %v712
    %v714 = vrot.slane %v705, %v713
    %v717 = vadd.f32 %v691, %v710
    %v718 = vadd.f32 %v692, %v714
    %v719 = vadd.f32 %v693, %v710
    %v720 = vadd.f32 %v694, %v714
    %v721 = vadd.f32 %v695, %v710
    %v722 = vadd.f32 %v696, %v714
    %v723 = vadd.f32 %v697, %v710
    %v724 = vadd.f32 %v698, %v714
    %v725 = vadd.f32 %v699, %v710
    %v726 = vadd.f32 %v700, %v714
    %v727 = vadd.f32 %v701, %v710
    %v728 = vadd.f32 %v702, %v714
    %v729 = vadd.f32 %v703, %v710
    %v730 = vadd.f32 %v704, %v714
    %v731 = vmax.f32 %v717, 0.0
    %v732 = vmax.f32 %v718, 0.0
    %v733 = vmax.f32 %v719, 0.0
    %v734 = vmax.f32 %v720, 0.0
    %v735 = vmax.f32 %v721, 0.0
    %v736 = vmax.f32 %v722, 0.0
    %v737 = vmax.f32 %v723, 0.0
    %v738 = vmax.f32 %v724, 0.0
    %v739 = vmax.f32 %v725, 0.0
    %v740 = vmax.f32 %v726, 0.0
    %v741 = vmax.f32 %v727, 0.0
    %v742 = vmax.f32 %v728, 0.0
    %v743 = vmax.f32 %v729, 0.0
    %v744 = vmax.f32 %v730, 0.0
    %745 = vst [vmem:[%s3] sm:$0xff] %v731
    %746 = vst [vmem:[%s3 + $0x8] sm:$0xff] %v732
    %747 = vst [vmem:[%s3 + $0x10] sm:$0xff] %v733
    %748 = vst [vmem:[%s3 + $0x18] sm:$0xff] %v734
    %749 = vst [vmem:[%s3 + $0x20] sm:$0xff] %v735
    %750 = vst [vmem:[%s3 + $0x28] sm:$0xff] %v736
    %751 = vst [vmem:[%s3 + $0x30] sm:$0xff] %v737
    %752 = vst [vmem:[%s3 + $0x38] sm:$0xff] %v738
    %753 = vst [vmem:[%s3 + $0x40] sm:$0xff] %v739
    %754 = vst [vmem:[%s3 + $0x48] sm:$0xff] %v740
    %755 = vst [vmem:[%s3 + $0x50] sm:$0xff] %v741
    %756 = vst [vmem:[%s3 + $0x58] sm:$0xff] %v742
    %757 = vst [vmem:[%s3 + $0x60] sm:$0xff] %v743
    %758 = vst [vmem:[%s3 + $0x68] sm:$0xff] %v744
  $region21: #{conv_autoencoder_forward.6} parent=0 // pred_fallthru
    _
  // Predicated region
  $region22: #{conv_autoencoder_forward.6} parent=0 // pred_check
    _
  $region23: #{conv_autoencoder_forward.6} parent=0 // pred_check_branch
    %760 = sbr.rel (0) target = $region25
  $region24: #{conv_autoencoder_forward.6} parent=0 // pred_region
    _
  $region25: #{conv_autoencoder_forward.6} parent=0 // pred_fallthru
    _
  // Predicated region
  $region26: #{conv_autoencoder_forward.6} parent=0 // pred_check
    _
  $region27: #{conv_autoencoder_forward.6} parent=0 // pred_check_branch
    %762 = sbr.rel (0) target = $region29
  $region28: #{conv_autoencoder_forward.6} parent=0 // pred_region
    _
  $region29: #{conv_autoencoder_forward.6} parent=0 // pred_fallthru
    _

// kernel: tile.18
$region0: #{tile.18}
  #allocation0 [shape = 's32[1]{0}', space=sflag, size = 0x4, scoped, tag = 'scoped memory for tile.18']
  %s0 = inlined_call_operand.vmem [shape: f32[3], index: 0, kind: input, shape index: {}]
  %s1 = inlined_call_operand.vmem [shape: f32[4,3], index: 1, kind: output, shape index: {}]
  // Predicated region
  $region2: #{tile.18} parent=0 // pred_check
    _
  $region3: #{tile.18} parent=0 // pred_check_branch
    %3 = sbr.rel (0) target = $region5
  $region4: #{tile.18} parent=0 // pred_region
    _
  $region5: #{tile.18} parent=0 // pred_fallthru
    _
  %v4 = vld [vmem:[%s0] ss:$0 sm:$0xff]
  %5 = vst [vmem:[%s1] sm:$0xf] %v4

// kernel: tile.19
$region0: #{tile.19}
  %s0 = inlined_call_operand.vmem [shape: f32[4,3], index: 0, kind: input, shape index: {}]
  %s1 = inlined_call_operand.vmem [shape: f32[12], index: 1, kind: output, shape index: {}]
  $region1: #{tile.19} parent=0
    #allocation0 [shape = 'u8[4096]{0}', space=vmem, size = 0x1000, scoped, tag = 'scoped mem for output reshape']
    #allocation1 [shape = 'u8[4096]{0}', space=vmem, size = 0x1000, scoped, tag = 'scoped mem for input reshape']
    %s3 = sshll.u32 1, 4
    %s4 = ssub.s32 %s3, 1
    %v5 = vld [vmem:[%s0] sm:%s4]
    %6 = vst [vmem:[#allocation1] sm:%s4] %v5
    %v7 = vld [vmem:[#allocation1] sm:$0x1]
    %vm8 = vcmask 23552
    %9 = vst.msk [vmem:[#allocation0] sm:$0x1] %vm8, %v7
    %s10 = scalar_lea.vmem [#allocation1], 3
    %v11 = vld [vmem:[%s10] sm:$0x1]
    %12 = vrot.lane.b32.xlu0 %v11, 9
    %v13 = vpop.permute.xlu0 %12
    %vm14 = vcmask 97352
    %15 = vst.msk [vmem:[#allocation0] sm:$0x1] %vm14, %v13
    %s16 = scalar_lea.vmem [#allocation1], 2
    %v17 = vld [vmem:[%s16] sm:$0x1]
    %18 = vrot.lane.b32.xlu0 %v17, 6
    %v19 = vpop.permute.xlu0 %18
    %vm20 = vcmask 72752
    %21 = vst.msk [vmem:[#allocation0] sm:$0x1] %vm20, %v19
    %s22 = scalar_lea.vmem [#allocation1], 1
    %v23 = vld [vmem:[%s22] sm:$0x1]
    %24 = vrot.lane.b32.xlu0 %v23, 3
    %v25 = vpop.permute.xlu0 %24
    %vm26 = vcmask 48152
    %27 = vst.msk [vmem:[#allocation0] sm:$0x1] %vm26, %v25
    %s29 = sshll.u32 1, 1
    %s30 = ssub.s32 %s29, 1
    %v32 = vld [vmem:[#allocation0] sm:%s30]
    %s33 = sshll.u32 1, 1
    %s34 = ssub.s32 %s33, 1
    %35 = vst [vmem:[%s1] sm:%s34] %v32

// kernel: conv_autoencoder_forward.7
$region0: #{conv_autoencoder_forward.7}
  #allocation0 [shape = 'u32[]', space=smem, size = 0x4, offset = 0x4, fixed_abs, tag = 'smem constant byte address 0x4 - core index']
  #allocation1 [shape = 'u32[144,128]{1,0:T(1,128)}', space=vmem, size = 0x12000, scoped, tag = 'internal scratch']
  #allocation2 [shape = 'f32[168,128]{1,0:T(8,128)}', space=vmem, size = 0x15000, scoped, tag = 'scratch operand']
  %s0 = inlined_call_operand.vmem [shape: bf16[168,256], index: 0, kind: input, shape index: {}]
  %s1 = inlined_call_operand.vmem [shape: bf16[256,128], index: 1, kind: input, shape index: {}]
  %s2 = inlined_call_operand.vmem [shape: f32[1,128], index: 2, kind: input, shape index: {}]
  %s3 = inlined_call_operand.vmem [shape: f32[168,128], index: 3, kind: output, shape index: {}]
  %s4 = sld [smem:[#allocation0]]
  $region30: #{conv_autoencoder_forward.7} parent=0
    _
  %s6 = ssub.s32 1, %s4
  %s7 = scalar_select 0, %s6, %s4
  // Predicated region
  $region2: #{conv_autoencoder_forward.7} parent=0 // pred_check
    _
  $region3: #{conv_autoencoder_forward.7} parent=0 // pred_check_branch
    %9 = sbr.rel (0) target = $region5
  $region4: #{conv_autoencoder_forward.7} parent=0 // pred_region
    _
  $region5: #{conv_autoencoder_forward.7} parent=0 // pred_fallthru
    _
  // Predicated region
  $region6: #{conv_autoencoder_forward.7} parent=0 // pred_check
    _
  $region7: #{conv_autoencoder_forward.7} parent=0 // pred_check_branch
    %11 = sbr.rel (0) target = $region9
  $region8: #{conv_autoencoder_forward.7} parent=0 // pred_region
    _
  $region9: #{conv_autoencoder_forward.7} parent=0 // pred_fallthru
    _
  // Predicated region
  $region10: #{conv_autoencoder_forward.7} parent=0 // pred_check
    _
  $region11: #{conv_autoencoder_forward.7} parent=0 // pred_check_branch
    %13 = sbr.rel (0) target = $region13
  $region12: #{conv_autoencoder_forward.7} parent=0 // pred_region
    _
  $region13: #{conv_autoencoder_forward.7} parent=0 // pred_fallthru
    _
  %p15 = scmp.eq.s32.totalorder 0, 0
  // Predicated region
  $region14: #{conv_autoencoder_forward.7} parent=0 // pred_check
    %p16 = pneg %p15
  $region15: #{conv_autoencoder_forward.7} parent=0 // pred_check_branch
    %18 = sbr.rel (%p16) target = $region17
  $region16: #{conv_autoencoder_forward.7} parent=0 // pred_region
    %19 = vst [vmem:[#allocation2] sm:$0xff] 0.0
    %20 = vst [vmem:[#allocation2 + $0x8] sm:$0xff] 0.0
    %21 = vst [vmem:[#allocation2 + $0x10] sm:$0xff] 0.0
    %22 = vst [vmem:[#allocation2 + $0x18] sm:$0xff] 0.0
    %23 = vst [vmem:[#allocation2 + $0x20] sm:$0xff] 0.0
    %24 = vst [vmem:[#allocation2 + $0x28] sm:$0xff] 0.0
    %25 = vst [vmem:[#allocation2 + $0x30] sm:$0xff] 0.0
    %26 = vst [vmem:[#allocation2 + $0x38] sm:$0xff] 0.0
    %27 = vst [vmem:[#allocation2 + $0x40] sm:$0xff] 0.0
    %28 = vst [vmem:[#allocation2 + $0x48] sm:$0xff] 0.0
    %29 = vst [vmem:[#allocation2 + $0x50] sm:$0xff] 0.0
    %30 = vst [vmem:[#allocation2 + $0x58] sm:$0xff] 0.0
    %31 = vst [vmem:[#allocation2 + $0x60] sm:$0xff] 0.0
    %32 = vst [vmem:[#allocation2 + $0x68] sm:$0xff] 0.0
    %33 = vst [vmem:[#allocation2 + $0x70] sm:$0xff] 0.0
    %34 = vst [vmem:[#allocation2 + $0x78] sm:$0xff] 0.0
    %35 = vst [vmem:[#allocation2 + $0x80] sm:$0xff] 0.0
    %36 = vst [vmem:[#allocation2 + $0x88] sm:$0xff] 0.0
    %37 = vst [vmem:[#allocation2 + $0x90] sm:$0xff] 0.0
    %38 = vst [vmem:[#allocation2 + $0x98] sm:$0xff] 0.0
    %39 = vst [vmem:[#allocation2 + $0xa0] sm:$0xff] 0.0
  $region17: #{conv_autoencoder_forward.7} parent=0 // pred_fallthru
    _
  %v40 = vld [vmem:[#allocation2] sm:$0xff]
  %v41 = vld [vmem:[#allocation2 + $0x8] sm:$0xff]
  %v42 = vld [vmem:[#allocation2 + $0x10] sm:$0xff]
  %v43 = vld [vmem:[#allocation2 + $0x18] sm:$0xff]
  %v44 = vld [vmem:[#allocation2 + $0x20] sm:$0xff]
  %v45 = vld [vmem:[#allocation2 + $0x28] sm:$0xff]
  %v46 = vld [vmem:[#allocation2 + $0x30] sm:$0xff]
  %v47 = vld [vmem:[#allocation2 + $0x38] sm:$0xff]
  %v48 = vld [vmem:[#allocation2 + $0x40] sm:$0xff]
  %v49 = vld [vmem:[#allocation2 + $0x48] sm:$0xff]
  %v50 = vld [vmem:[#allocation2 + $0x50] sm:$0xff]
  %v51 = vld [vmem:[#allocation2 + $0x58] sm:$0xff]
  %v52 = vld [vmem:[#allocation2 + $0x60] sm:$0xff]
  %v53 = vld [vmem:[#allocation2 + $0x68] sm:$0xff]
  %v54 = vld [vmem:[#allocation2 + $0x70] sm:$0xff]
  %v55 = vld [vmem:[#allocation2 + $0x78] sm:$0xff]
  %v56 = vld [vmem:[#allocation2 + $0x80] sm:$0xff]
  %v57 = vld [vmem:[#allocation2 + $0x88] sm:$0xff]
  %v58 = vld [vmem:[#allocation2 + $0x90] sm:$0xff]
  %v59 = vld [vmem:[#allocation2 + $0x98] sm:$0xff]
  %v60 = vld [vmem:[#allocation2 + $0xa0] sm:$0xff]
  %v61 = vld [vmem:[%s0] sm:$0xff]
  %v62 = vld [vmem:[%s0 + $0x8] sm:$0xff]
  %v63 = vld [vmem:[%s0 + $0x10] sm:$0xff]
  %v64 = vld [vmem:[%s0 + $0x18] sm:$0xff]
  %v65 = vld [vmem:[%s0 + $0x20] sm:$0xff]
  %v66 = vld [vmem:[%s0 + $0x28] sm:$0xff]
  %v67 = vld [vmem:[%s0 + $0x30] sm:$0xff]
  %v68 = vld [vmem:[%s0 + $0x38] sm:$0xff]
  %v69 = vld [vmem:[%s0 + $0x40] sm:$0xff]
  %v70 = vld [vmem:[%s0 + $0x48] sm:$0xff]
  %v71 = vld [vmem:[%s0 + $0x50] sm:$0xff]
  %v72 = vld [vmem:[%s0 + $0x58] sm:$0xff]
  %v73 = vld [vmem:[%s0 + $0x60] sm:$0xff]
  %v74 = vld [vmem:[%s0 + $0x68] sm:$0xff]
  %v75 = vld [vmem:[%s0 + $0x70] sm:$0xff]
  %v76 = vld [vmem:[%s0 + $0x78] sm:$0xff]
  %v77 = vld [vmem:[%s0 + $0x80] sm:$0xff]
  %v78 = vld [vmem:[%s0 + $0x88] sm:$0xff]
  %v79 = vld [vmem:[%s0 + $0x90] sm:$0xff]
  %v80 = vld [vmem:[%s0 + $0x98] sm:$0xff]
  %v81 = vld [vmem:[%s0 + $0xa0] sm:$0xff]
  %v82 = vld [vmem:[%s1] sm:$0xf]
  %v83 = vld [vmem:[%s1 + $0x4] sm:$0xf]
  %v84 = vld [vmem:[%s1 + $0x8] sm:$0xf]
  %v85 = vld [vmem:[%s1 + $0xc] sm:$0xf]
  %v86 = vld [vmem:[%s1 + $0x10] sm:$0xf]
  %v87 = vld [vmem:[%s1 + $0x14] sm:$0xf]
  %v88 = vld [vmem:[%s1 + $0x18] sm:$0xf]
  %v89 = vld [vmem:[%s1 + $0x1c] sm:$0xf]
  %v90 = vld [vmem:[%s1 + $0x20] sm:$0xf]
  %v91 = vld [vmem:[%s1 + $0x24] sm:$0xf]
  %v92 = vld [vmem:[%s1 + $0x28] sm:$0xf]
  %v93 = vld [vmem:[%s1 + $0x2c] sm:$0xf]
  %v94 = vld [vmem:[%s1 + $0x30] sm:$0xf]
  %v95 = vld [vmem:[%s1 + $0x34] sm:$0xf]
  %v96 = vld [vmem:[%s1 + $0x38] sm:$0xf]
  %v97 = vld [vmem:[%s1 + $0x3c] sm:$0xf]
  %v98 = vld [vmem:[%s1 + $0x40] sm:$0xf]
  %v99 = vld [vmem:[%s1 + $0x44] sm:$0xf]
  %v100 = vld [vmem:[%s1 + $0x48] sm:$0xf]
  %v101 = vld [vmem:[%s1 + $0x4c] sm:$0xf]
  %v102 = vld [vmem:[%s1 + $0x50] sm:$0xf]
  %v103 = vld [vmem:[%s1 + $0x54] sm:$0xf]
  %v104 = vld [vmem:[%s1 + $0x58] sm:$0xf]
  %v105 = vld [vmem:[%s1 + $0x5c] sm:$0xf]
  %v106 = vld [vmem:[%s1 + $0x60] sm:$0xf]
  %v107 = vld [vmem:[%s1 + $0x64] sm:$0xf]
  %v108 = vld [vmem:[%s1 + $0x68] sm:$0xf]
  %v109 = vld [vmem:[%s1 + $0x6c] sm:$0xf]
  %v110 = vld [vmem:[%s1 + $0x70] sm:$0xf]
  %v111 = vld [vmem:[%s1 + $0x74] sm:$0xf]
  %v112 = vld [vmem:[%s1 + $0x78] sm:$0xf]
  %v113 = vld [vmem:[%s1 + $0x7c] sm:$0xf]
  %v135 = vunpack.c.l.b16 %v61
  %v136 = vunpack.c.h.b16 %v61
  %v137 = vunpack.c.l.b16 %v62
  %v138 = vunpack.c.h.b16 %v62
  %v139 = vunpack.c.l.b16 %v63
  %v140 = vunpack.c.h.b16 %v63
  %v141 = vunpack.c.l.b16 %v64
  %v142 = vunpack.c.h.b16 %v64
  %v143 = vunpack.c.l.b16 %v65
  %v144 = vunpack.c.h.b16 %v65
  %v145 = vunpack.c.l.b16 %v66
  %v146 = vunpack.c.h.b16 %v66
  %v147 = vunpack.c.l.b16 %v67
  %v148 = vunpack.c.h.b16 %v67
  %v149 = vunpack.c.l.b16 %v68
  %v150 = vunpack.c.h.b16 %v68
  %v151 = vunpack.c.l.b16 %v69
  %v152 = vunpack.c.h.b16 %v69
  %v153 = vunpack.c.l.b16 %v70
  %v154 = vunpack.c.h.b16 %v70
  %v155 = vunpack.c.l.b16 %v71
  %v156 = vunpack.c.h.b16 %v71
  %v157 = vunpack.c.l.b16 %v72
  %v158 = vunpack.c.h.b16 %v72
  %v159 = vunpack.c.l.b16 %v73
  %v160 = vunpack.c.h.b16 %v73
  %v161 = vunpack.c.l.b16 %v74
  %v162 = vunpack.c.h.b16 %v74
  %v163 = vunpack.c.l.b16 %v75
  %v164 = vunpack.c.h.b16 %v75
  %v165 = vunpack.c.l.b16 %v76
  %v166 = vunpack.c.h.b16 %v76
  %v167 = vunpack.c.l.b16 %v77
  %v168 = vunpack.c.h.b16 %v77
  %v169 = vunpack.c.l.b16 %v78
  %v170 = vunpack.c.h.b16 %v78
  %v171 = vunpack.c.l.b16 %v79
  %v172 = vunpack.c.h.b16 %v79
  %v173 = vunpack.c.l.b16 %v80
  %v174 = vunpack.c.h.b16 %v80
  %v175 = vunpack.c.l.b16 %v81
  %v176 = vunpack.c.h.b16 %v81
  %v177 = vpack.c.b16 %v137, %v135
  %v178 = vpack.c.b16 %v138, %v136
  %v179 = vpack.c.b16 %v141, %v139
  %v180 = vpack.c.b16 %v142, %v140
  %v181 = vpack.c.b16 %v145, %v143
  %v182 = vpack.c.b16 %v146, %v144
  %v183 = vpack.c.b16 %v149, %v147
  %v184 = vpack.c.b16 %v150, %v148
  %v185 = vpack.c.b16 %v153, %v151
  %v186 = vpack.c.b16 %v154, %v152
  %v187 = vpack.c.b16 %v157, %v155
  %v188 = vpack.c.b16 %v158, %v156
  %v189 = vpack.c.b16 %v161, %v159
  %v190 = vpack.c.b16 %v162, %v160
  %v191 = vpack.c.b16 %v165, %v163
  %v192 = vpack.c.b16 %v166, %v164
  %v193 = vpack.c.b16 %v169, %v167
  %v194 = vpack.c.b16 %v170, %v168
  %v195 = vpack.c.b16 %v173, %v171
  %v196 = vpack.c.b16 %v174, %v172
  %v197 = vpack.c.b16 %v175, %v175
  %v198 = vpack.c.b16 %v176, %v176
  %v253 = vunpack.c.l.b16 %v82
  %v254 = vunpack.c.l.b16 %v83
  %v255 = vunpack.c.l.b16 %v84
  %v256 = vunpack.c.l.b16 %v85
  %v257 = vunpack.c.l.b16 %v86
  %v258 = vunpack.c.l.b16 %v87
  %v259 = vunpack.c.l.b16 %v88
  %v260 = vunpack.c.l.b16 %v89
  %v261 = vunpack.c.l.b16 %v90
  %v262 = vunpack.c.l.b16 %v91
  %v263 = vunpack.c.l.b16 %v92
  %v264 = vunpack.c.l.b16 %v93
  %v265 = vunpack.c.l.b16 %v94
  %v266 = vunpack.c.l.b16 %v95
  %v267 = vunpack.c.l.b16 %v96
  %v268 = vunpack.c.l.b16 %v97
  %v269 = vunpack.c.l.b16 %v98
  %v270 = vunpack.c.l.b16 %v99
  %v271 = vunpack.c.l.b16 %v100
  %v272 = vunpack.c.l.b16 %v101
  %v273 = vunpack.c.l.b16 %v102
  %v274 = vunpack.c.l.b16 %v103
  %v275 = vunpack.c.l.b16 %v104
  %v276 = vunpack.c.l.b16 %v105
  %v277 = vunpack.c.l.b16 %v106
  %v278 = vunpack.c.l.b16 %v107
  %v279 = vunpack.c.l.b16 %v108
  %v280 = vunpack.c.l.b16 %v109
  %v281 = vunpack.c.l.b16 %v110
  %v282 = vunpack.c.l.b16 %v111
  %v283 = vunpack.c.l.b16 %v112
  %v284 = vunpack.c.l.b16 %v113
  %v285 = vpack.c.b16 %v254, %v253
  %v286 = vpack.c.b16 %v256, %v255
  %v287 = vpack.c.b16 %v258, %v257
  %v288 = vpack.c.b16 %v260, %v259
  %v289 = vpack.c.b16 %v262, %v261
  %v290 = vpack.c.b16 %v264, %v263
  %v291 = vpack.c.b16 %v266, %v265
  %v292 = vpack.c.b16 %v268, %v267
  %v293 = vpack.c.b16 %v270, %v269
  %v294 = vpack.c.b16 %v272, %v271
  %v295 = vpack.c.b16 %v274, %v273
  %v296 = vpack.c.b16 %v276, %v275
  %v297 = vpack.c.b16 %v278, %v277
  %v298 = vpack.c.b16 %v280, %v279
  %v299 = vpack.c.b16 %v282, %v281
  %v300 = vpack.c.b16 %v284, %v283
  %317 = vmatprep.subr.bf16.mxu0 0
  %318 = vmatpush1.bf16.msra.mxu0 %v292
  %319 = vmatprep.subr.bf16.mxu0 0
  %320 = vmatpush1.bf16.msra.mxu0 %v291
  %321 = vmatprep.subr.bf16.mxu0 0
  %322 = vmatpush1.bf16.msra.mxu0 %v290
  %323 = vmatprep.subr.bf16.mxu0 0
  %324 = vmatpush1.bf16.msra.mxu0 %v289
  %325 = vmatprep.subr.bf16.mxu0 0
  %326 = vmatpush1.bf16.msra.mxu0 %v288
  %327 = vmatprep.subr.bf16.mxu0 0
  %328 = vmatpush1.bf16.msra.mxu0 %v287
  %329 = vmatprep.subr.bf16.mxu0 0
  %330 = vmatpush1.bf16.msra.mxu0 %v286
  %331 = vmatprep.subr.bf16.mxu0 0
  %332 = vmatpush1.bf16.msra.mxu0 %v285
  %333 = vmatprep.subr.bf16.mxu0 0
  %334 = vmatpush2.bf16.msra.mxu0 %v300
  %335 = vmatprep.subr.bf16.mxu0 0
  %336 = vmatpush2.bf16.msra.mxu0 %v299
  %337 = vmatprep.subr.bf16.mxu0 0
  %338 = vmatpush2.bf16.msra.mxu0 %v298
  %339 = vmatprep.subr.bf16.mxu0 0
  %340 = vmatpush2.bf16.msra.mxu0 %v297
  %341 = vmatprep.subr.bf16.mxu0 0
  %342 = vmatpush2.bf16.msra.mxu0 %v296
  %343 = vmatprep.subr.bf16.mxu0 0
  %344 = vmatpush2.bf16.msra.mxu0 %v295
  %345 = vmatprep.subr.bf16.mxu0 0
  %346 = vmatpush2.bf16.msra.mxu0 %v294
  %347 = vmatprep.subr.bf16.mxu0 0
  %348 = vmatpush2.bf16.msra.mxu0 %v293
  %349 = vmatprep.mubr.bf16.mxu0 %v178
  %350 = vmatmul.mubr.bf16.gmra.mxu0 %v177
  %v351 = vpop.f32.mrf.mxu0
  %v352 = vadd.f32 0.0, %v351
  %v353 = vpop.f32.mrf.mxu0
  %v354 = vpop.f32.mrf.mxu0
  %v355 = vadd.f32 0.0, %v354
  %v356 = vpop.f32.mrf.mxu0
  %357 = vmatprep.mubr.bf16.mxu0 %v180
  %358 = vmatmul.mubr.bf16.gmra.mxu0 %v179
  %v359 = vpop.f32.mrf.mxu0
  %v360 = vadd.f32 0.0, %v359
  %v361 = vpop.f32.mrf.mxu0
  %v362 = vpop.f32.mrf.mxu0
  %v363 = vadd.f32 0.0, %v362
  %v364 = vpop.f32.mrf.mxu0
  %365 = vmatprep.mubr.bf16.mxu0 %v182
  %366 = vmatmul.mubr.bf16.gmra.mxu0 %v181
  %v367 = vpop.f32.mrf.mxu0
  %v368 = vadd.f32 0.0, %v367
  %v369 = vpop.f32.mrf.mxu0
  %v370 = vpop.f32.mrf.mxu0
  %v371 = vadd.f32 0.0, %v370
  %v372 = vpop.f32.mrf.mxu0
  %373 = vmatprep.mubr.bf16.mxu0 %v184
  %374 = vmatmul.mubr.bf16.gmra.mxu0 %v183
  %v375 = vpop.f32.mrf.mxu0
  %v376 = vadd.f32 0.0, %v375
  %v377 = vpop.f32.mrf.mxu0
  %v378 = vpop.f32.mrf.mxu0
  %v379 = vadd.f32 0.0, %v378
  %v380 = vpop.f32.mrf.mxu0
  %381 = vmatprep.mubr.bf16.mxu0 %v186
  %382 = vmatmul.mubr.bf16.gmra.mxu0 %v185
  %v383 = vpop.f32.mrf.mxu0
  %v384 = vadd.f32 0.0, %v383
  %v385 = vpop.f32.mrf.mxu0
  %v386 = vpop.f32.mrf.mxu0
  %v387 = vadd.f32 0.0, %v386
  %v388 = vpop.f32.mrf.mxu0
  %389 = vmatprep.mubr.bf16.mxu0 %v188
  %390 = vmatmul.mubr.bf16.gmra.mxu0 %v187
  %v391 = vpop.f32.mrf.mxu0
  %v392 = vadd.f32 0.0, %v391
  %v393 = vpop.f32.mrf.mxu0
  %v394 = vpop.f32.mrf.mxu0
  %v395 = vadd.f32 0.0, %v394
  %v396 = vpop.f32.mrf.mxu0
  %397 = vmatprep.mubr.bf16.mxu0 %v190
  %398 = vmatmul.mubr.bf16.gmra.mxu0 %v189
  %v399 = vpop.f32.mrf.mxu0
  %v400 = vadd.f32 0.0, %v399
  %v401 = vpop.f32.mrf.mxu0
  %v402 = vpop.f32.mrf.mxu0
  %v403 = vadd.f32 0.0, %v402
  %v404 = vpop.f32.mrf.mxu0
  %405 = vmatprep.mubr.bf16.mxu0 %v192
  %406 = vmatmul.mubr.bf16.gmra.mxu0 %v191
  %v407 = vpop.f32.mrf.mxu0
  %v408 = vadd.f32 0.0, %v407
  %v409 = vpop.f32.mrf.mxu0
  %v410 = vpop.f32.mrf.mxu0
  %v411 = vadd.f32 0.0, %v410
  %v412 = vpop.f32.mrf.mxu0
  %413 = vmatprep.mubr.bf16.mxu0 %v194
  %414 = vmatmul.mubr.bf16.gmra.mxu0 %v193
  %v415 = vpop.f32.mrf.mxu0
  %v416 = vadd.f32 0.0, %v415
  %v417 = vpop.f32.mrf.mxu0
  %v418 = vpop.f32.mrf.mxu0
  %v419 = vadd.f32 0.0, %v418
  %v420 = vpop.f32.mrf.mxu0
  %421 = vmatprep.mubr.bf16.mxu0 %v196
  %422 = vmatmul.mubr.bf16.gmra.mxu0 %v195
  %v423 = vpop.f32.mrf.mxu0
  %v424 = vadd.f32 0.0, %v423
  %v425 = vpop.f32.mrf.mxu0
  %v426 = vpop.f32.mrf.mxu0
  %v427 = vadd.f32 0.0, %v426
  %v428 = vpop.f32.mrf.mxu0
  %429 = vmatprep.mubr.bf16.mxu0 %v198
  %430 = vmatmul.mubr.bf16.gmra.mxu0 %v197
  %v431 = vpop.f32.mrf.mxu0
  %v432 = vadd.f32 0.0, %v431
  %v433 = vpop.f32.mrf.mxu0
  %v434 = vpop.f32.mrf.mxu0
  %v435 = vpop.f32.mrf.mxu0
  %436 = vdwg.mxu0
  %v437 = vadd.f32 %v40, %v352
  %v438 = vadd.f32 %v41, %v355
  %v439 = vadd.f32 %v42, %v360
  %v440 = vadd.f32 %v43, %v363
  %v441 = vadd.f32 %v44, %v368
  %v442 = vadd.f32 %v45, %v371
  %v443 = vadd.f32 %v46, %v376
  %v444 = vadd.f32 %v47, %v379
  %v445 = vadd.f32 %v48, %v384
  %v446 = vadd.f32 %v49, %v387
  %v447 = vadd.f32 %v50, %v392
  %v448 = vadd.f32 %v51, %v395
  %v449 = vadd.f32 %v52, %v400
  %v450 = vadd.f32 %v53, %v403
  %v451 = vadd.f32 %v54, %v408
  %v452 = vadd.f32 %v55, %v411
  %v453 = vadd.f32 %v56, %v416
  %v454 = vadd.f32 %v57, %v419
  %v455 = vadd.f32 %v58, %v424
  %v456 = vadd.f32 %v59, %v427
  %v457 = vadd.f32 %v60, %v432
  %458 = vst [vmem:[#allocation2] sm:$0xff] %v437
  %459 = vst [vmem:[#allocation2 + $0x8] sm:$0xff] %v438
  %460 = vst [vmem:[#allocation2 + $0x10] sm:$0xff] %v439
  %461 = vst [vmem:[#allocation2 + $0x18] sm:$0xff] %v440
  %462 = vst [vmem:[#allocation2 + $0x20] sm:$0xff] %v441
  %463 = vst [vmem:[#allocation2 + $0x28] sm:$0xff] %v442
  %464 = vst [vmem:[#allocation2 + $0x30] sm:$0xff] %v443
  %465 = vst [vmem:[#allocation2 + $0x38] sm:$0xff] %v444
  %466 = vst [vmem:[#allocation2 + $0x40] sm:$0xff] %v445
  %467 = vst [vmem:[#allocation2 + $0x48] sm:$0xff] %v446
  %468 = vst [vmem:[#allocation2 + $0x50] sm:$0xff] %v447
  %469 = vst [vmem:[#allocation2 + $0x58] sm:$0xff] %v448
  %470 = vst [vmem:[#allocation2 + $0x60] sm:$0xff] %v449
  %471 = vst [vmem:[#allocation2 + $0x68] sm:$0xff] %v450
  %472 = vst [vmem:[#allocation2 + $0x70] sm:$0xff] %v451
  %473 = vst [vmem:[#allocation2 + $0x78] sm:$0xff] %v452
  %474 = vst [vmem:[#allocation2 + $0x80] sm:$0xff] %v453
  %475 = vst [vmem:[#allocation2 + $0x88] sm:$0xff] %v454
  %476 = vst [vmem:[#allocation2 + $0x90] sm:$0xff] %v455
  %477 = vst [vmem:[#allocation2 + $0x98] sm:$0xff] %v456
  %478 = vst [vmem:[#allocation2 + $0xa0] sm:$0xff] %v457
  // Predicated region
  $region18: #{conv_autoencoder_forward.7} parent=0 // pred_check
    %p479 = pneg %p15
  $region19: #{conv_autoencoder_forward.7} parent=0 // pred_check_branch
    %481 = sbr.rel (%p479) target = $region21
  $region20: #{conv_autoencoder_forward.7} parent=0 // pred_region
    %v482 = vld [vmem:[#allocation2] sm:$0xff]
    %v483 = vld [vmem:[#allocation2 + $0x8] sm:$0xff]
    %v484 = vld [vmem:[#allocation2 + $0x10] sm:$0xff]
    %v485 = vld [vmem:[#allocation2 + $0x18] sm:$0xff]
    %v486 = vld [vmem:[#allocation2 + $0x20] sm:$0xff]
    %v487 = vld [vmem:[#allocation2 + $0x28] sm:$0xff]
    %v488 = vld [vmem:[#allocation2 + $0x30] sm:$0xff]
    %v489 = vld [vmem:[#allocation2 + $0x38] sm:$0xff]
    %v490 = vld [vmem:[#allocation2 + $0x40] sm:$0xff]
    %v491 = vld [vmem:[#allocation2 + $0x48] sm:$0xff]
    %v492 = vld [vmem:[#allocation2 + $0x50] sm:$0xff]
    %v493 = vld [vmem:[#allocation2 + $0x58] sm:$0xff]
    %v494 = vld [vmem:[#allocation2 + $0x60] sm:$0xff]
    %v495 = vld [vmem:[#allocation2 + $0x68] sm:$0xff]
    %v496 = vld [vmem:[#allocation2 + $0x70] sm:$0xff]
    %v497 = vld [vmem:[#allocation2 + $0x78] sm:$0xff]
    %v498 = vld [vmem:[#allocation2 + $0x80] sm:$0xff]
    %v499 = vld [vmem:[#allocation2 + $0x88] sm:$0xff]
    %v500 = vld [vmem:[#allocation2 + $0x90] sm:$0xff]
    %v501 = vld [vmem:[#allocation2 + $0x98] sm:$0xff]
    %v502 = vld [vmem:[#allocation2 + $0xa0] sm:$0xff]
    %v503 = vld [vmem:[%s2] sm:$0x1]
    %v505 = vlaneseq
    %v506 = vshrl.u32 %v505, 7
    %v507 = vsub.s32 0, %v506
    %v508 = vrot.slane %v503, %v507
    %v510 = vadd.f32 %v482, %v508
    %v511 = vadd.f32 %v483, %v508
    %v512 = vadd.f32 %v484, %v508
    %v513 = vadd.f32 %v485, %v508
    %v514 = vadd.f32 %v486, %v508
    %v515 = vadd.f32 %v487, %v508
    %v516 = vadd.f32 %v488, %v508
    %v517 = vadd.f32 %v489, %v508
    %v518 = vadd.f32 %v490, %v508
    %v519 = vadd.f32 %v491, %v508
    %v520 = vadd.f32 %v492, %v508
    %v521 = vadd.f32 %v493, %v508
    %v522 = vadd.f32 %v494, %v508
    %v523 = vadd.f32 %v495, %v508
    %v524 = vadd.f32 %v496, %v508
    %v525 = vadd.f32 %v497, %v508
    %v526 = vadd.f32 %v498, %v508
    %v527 = vadd.f32 %v499, %v508
    %v528 = vadd.f32 %v500, %v508
    %v529 = vadd.f32 %v501, %v508
    %v530 = vadd.f32 %v502, %v508
    %v531 = vsub.f32 0.0, %v510
    %v532 = vsub.f32 0.0, %v511
    %v533 = vsub.f32 0.0, %v512
    %v534 = vsub.f32 0.0, %v513
    %v535 = vsub.f32 0.0, %v514
    %v536 = vsub.f32 0.0, %v515
    %v537 = vsub.f32 0.0, %v516
    %v538 = vsub.f32 0.0, %v517
    %v539 = vsub.f32 0.0, %v518
    %v540 = vsub.f32 0.0, %v519
    %v541 = vsub.f32 0.0, %v520
    %v542 = vsub.f32 0.0, %v521
    %v543 = vsub.f32 0.0, %v522
    %v544 = vsub.f32 0.0, %v523
    %v545 = vsub.f32 0.0, %v524
    %v546 = vsub.f32 0.0, %v525
    %v547 = vsub.f32 0.0, %v526
    %v548 = vsub.f32 0.0, %v527
    %v549 = vsub.f32 0.0, %v528
    %v550 = vsub.f32 0.0, %v529
    %v551 = vsub.f32 0.0, %v530
    %v552 = vmul.f32 %v531, 1.442695
    %v553 = vpow.pop %v552
    %v554 = vmul.f32 %v532, 1.442695
    %v555 = vpow.pop %v554
    %v556 = vmul.f32 %v533, 1.442695
    %v557 = vpow.pop %v556
    %v558 = vmul.f32 %v534, 1.442695
    %v559 = vpow.pop %v558
    %v560 = vmul.f32 %v535, 1.442695
    %v561 = vpow.pop %v560
    %v562 = vmul.f32 %v536, 1.442695
    %v563 = vpow.pop %v562
    %v564 = vmul.f32 %v537, 1.442695
    %v565 = vpow.pop %v564
    %v566 = vmul.f32 %v538, 1.442695
    %v567 = vpow.pop %v566
    %v568 = vmul.f32 %v539, 1.442695
    %v569 = vpow.pop %v568
    %v570 = vmul.f32 %v540, 1.442695
    %v571 = vpow.pop %v570
    %v572 = vmul.f32 %v541, 1.442695
    %v573 = vpow.pop %v572
    %v574 = vmul.f32 %v542, 1.442695
    %v575 = vpow.pop %v574
    %v576 = vmul.f32 %v543, 1.442695
    %v577 = vpow.pop %v576
    %v578 = vmul.f32 %v544, 1.442695
    %v579 = vpow.pop %v578
    %v580 = vmul.f32 %v545, 1.442695
    %v581 = vpow.pop %v580
    %v582 = vmul.f32 %v546, 1.442695
    %v583 = vpow.pop %v582
    %v584 = vmul.f32 %v547, 1.442695
    %v585 = vpow.pop %v584
    %v586 = vmul.f32 %v548, 1.442695
    %v587 = vpow.pop %v586
    %v588 = vmul.f32 %v549, 1.442695
    %v589 = vpow.pop %v588
    %v590 = vmul.f32 %v550, 1.442695
    %v591 = vpow.pop %v590
    %v592 = vmul.f32 %v551, 1.442695
    %v593 = vpow.pop %v592
    %v594 = vadd.f32 %v553, 1.0
    %v595 = vadd.f32 %v555, 1.0
    %v596 = vadd.f32 %v557, 1.0
    %v597 = vadd.f32 %v559, 1.0
    %v598 = vadd.f32 %v561, 1.0
    %v599 = vadd.f32 %v563, 1.0
    %v600 = vadd.f32 %v565, 1.0
    %v601 = vadd.f32 %v567, 1.0
    %v602 = vadd.f32 %v569, 1.0
    %v603 = vadd.f32 %v571, 1.0
    %v604 = vadd.f32 %v573, 1.0
    %v605 = vadd.f32 %v575, 1.0
    %v606 = vadd.f32 %v577, 1.0
    %v607 = vadd.f32 %v579, 1.0
    %v608 = vadd.f32 %v581, 1.0
    %v609 = vadd.f32 %v583, 1.0
    %v610 = vadd.f32 %v585, 1.0
    %v611 = vadd.f32 %v587, 1.0
    %v612 = vadd.f32 %v589, 1.0
    %v613 = vadd.f32 %v591, 1.0
    %v614 = vadd.f32 %v593, 1.0
    %v615 = vrcp.pop %v594
    %v616 = vmul.f32 1.0, %v615
    %v617 = vrcp.pop %v595
    %v618 = vmul.f32 1.0, %v617
    %v619 = vrcp.pop %v596
    %v620 = vmul.f32 1.0, %v619
    %v621 = vrcp.pop %v597
    %v622 = vmul.f32 1.0, %v621
    %v623 = vrcp.pop %v598
    %v624 = vmul.f32 1.0, %v623
    %v625 = vrcp.pop %v599
    %v626 = vmul.f32 1.0, %v625
    %v627 = vrcp.pop %v600
    %v628 = vmul.f32 1.0, %v627
    %v629 = vrcp.pop %v601
    %v630 = vmul.f32 1.0, %v629
    %v631 = vrcp.pop %v602
    %v632 = vmul.f32 1.0, %v631
    %v633 = vrcp.pop %v603
    %v634 = vmul.f32 1.0, %v633
    %v635 = vrcp.pop %v604
    %v636 = vmul.f32 1.0, %v635
    %v637 = vrcp.pop %v605
    %v638 = vmul.f32 1.0, %v637
    %v639 = vrcp.pop %v606
    %v640 = vmul.f32 1.0, %v639
    %v641 = vrcp.pop %v607
    %v642 = vmul.f32 1.0, %v641
    %v643 = vrcp.pop %v608
    %v644 = vmul.f32 1.0, %v643
    %v645 = vrcp.pop %v609
    %v646 = vmul.f32 1.0, %v645
    %v647 = vrcp.pop %v610
    %v648 = vmul.f32 1.0, %v647
    %v649 = vrcp.pop %v611
    %v650 = vmul.f32 1.0, %v649
    %v651 = vrcp.pop %v612
    %v652 = vmul.f32 1.0, %v651
    %v653 = vrcp.pop %v613
    %v654 = vmul.f32 1.0, %v653
    %v655 = vrcp.pop %v614
    %v656 = vmul.f32 1.0, %v655
    %657 = vst [vmem:[%s3] sm:$0xff] %v616
    %658 = vst [vmem:[%s3 + $0x8] sm:$0xff] %v618
    %659 = vst [vmem:[%s3 + $0x10] sm:$0xff] %v620
    %660 = vst [vmem:[%s3 + $0x18] sm:$0xff] %v622
    %661 = vst [vmem:[%s3 + $0x20] sm:$0xff] %v624
    %662 = vst [vmem:[%s3 + $0x28] sm:$0xff] %v626
    %663 = vst [vmem:[%s3 + $0x30] sm:$0xff] %v628
    %664 = vst [vmem:[%s3 + $0x38] sm:$0xff] %v630
    %665 = vst [vmem:[%s3 + $0x40] sm:$0xff] %v632
    %666 = vst [vmem:[%s3 + $0x48] sm:$0xff] %v634
    %667 = vst [vmem:[%s3 + $0x50] sm:$0xff] %v636
    %668 = vst [vmem:[%s3 + $0x58] sm:$0xff] %v638
    %669 = vst [vmem:[%s3 + $0x60] sm:$0xff] %v640
    %670 = vst [vmem:[%s3 + $0x68] sm:$0xff] %v642
    %671 = vst [vmem:[%s3 + $0x70] sm:$0xff] %v644
    %672 = vst [vmem:[%s3 + $0x78] sm:$0xff] %v646
    %673 = vst [vmem:[%s3 + $0x80] sm:$0xff] %v648
    %674 = vst [vmem:[%s3 + $0x88] sm:$0xff] %v650
    %675 = vst [vmem:[%s3 + $0x90] sm:$0xff] %v652
    %676 = vst [vmem:[%s3 + $0x98] sm:$0xff] %v654
    %677 = vst [vmem:[%s3 + $0xa0] sm:$0xff] %v656
  $region21: #{conv_autoencoder_forward.7} parent=0 // pred_fallthru
    _
  // Predicated region
  $region22: #{conv_autoencoder_forward.7} parent=0 // pred_check
    _
  $region23: #{conv_autoencoder_forward.7} parent=0 // pred_check_branch
    %679 = sbr.rel (0) target = $region25
  $region24: #{conv_autoencoder_forward.7} parent=0 // pred_region
    _
  $region25: #{conv_autoencoder_forward.7} parent=0 // pred_fallthru
    _
  // Predicated region
  $region26: #{conv_autoencoder_forward.7} parent=0 // pred_check
    _
  $region27: #{conv_autoencoder_forward.7} parent=0 // pred_check_branch
    %681 = sbr.rel (0) target = $region29
  $region28: #{conv_autoencoder_forward.7} parent=0 // pred_region
    _
  $region29: #{conv_autoencoder_forward.7} parent=0 // pred_fallthru
    _

</llo_original>
